<compile_context>
chip_gen: v7x
topology: tpu7x:2x2x1
jax: 0.10.0
libtpu: 0.0.40
codegen_flags: <defaults>
</compile_context>

<pallas_src>
import jax
import jax.numpy as jnp
from jax.experimental import pallas as pl
from jax.experimental.pallas import tpu as pltpu


# ----------------------------------------------------------------------------
# Mask construction (same semantics as the PyTorch get_mask)
# ----------------------------------------------------------------------------
def get_mask(in_features, out_features, in_flow_features, mask_type=None):
    if mask_type == 'input':
        in_degrees = jnp.arange(in_features) % in_flow_features
    else:
        in_degrees = jnp.arange(in_features) % (in_flow_features - 1)
    if mask_type == 'output':
        out_degrees = jnp.arange(out_features) % in_flow_features - 1
    else:
        out_degrees = jnp.arange(out_features) % (in_flow_features - 1)
    # shape (out_features, in_features), matching torch weight layout
    return (out_degrees[:, None] >= in_degrees[None, :]).astype(jnp.float32)


# ----------------------------------------------------------------------------
# Pallas kernel: full MADE forward (direct mode) for one batch tile
# ----------------------------------------------------------------------------
def made_kernel(x_ref, cond_ref,
                w1_ref, b1_ref, wc_ref,
                w2_ref, b2_ref,
                w3m_ref, b3m_ref, w3a_ref, b3a_ref,
                wld_ref, bld_ref,
                u_ref, ld_ref):
    f32 = jnp.float32
    x = x_ref[...]                                   # (TB, D)  f32
    xb = x.astype(jnp.bfloat16)
    cb = cond_ref[...].astype(jnp.bfloat16)          # (TB, C)  bf16

    # joiner: masked linear(D -> Hp) + conditional linear (no bias)
    h = jnp.dot(xb, w1_ref[...], preferred_element_type=f32)
    h = h + jnp.dot(cb, wc_ref[...], preferred_element_type=f32)
    h = h + b1_ref[...]
    h = jnp.maximum(h, 0.0).astype(jnp.bfloat16)

    # trunk hidden layer: masked linear(Hp -> Hp)
    h = jnp.dot(h, w2_ref[...], preferred_element_type=f32) + b2_ref[...]
    h = jnp.maximum(h, 0.0).astype(jnp.bfloat16)

    # output layer split into m-half / a-half (no mid-lane slicing); the
    # log-det column is folded into the MXU: -sum_j a_j == h @ wld + bld
    m = jnp.dot(h, w3m_ref[...], preferred_element_type=f32) + b3m_ref[...]
    a = jnp.dot(h, w3a_ref[...], preferred_element_type=f32) + b3a_ref[...]
    ld = jnp.dot(h, wld_ref[...], preferred_element_type=f32) + bld_ref[...]

    u_ref[...] = (x - m) * jnp.exp(-a)               # exp on EUP (free slot)
    ld_ref[...] = ld


def _pick_block_b(B, target=512):
    """Largest batch tile <= target that divides B (multiple of 8 if possible)."""
    if B <= target:
        return B
    start = target - (target % 8)
    for tb in range(start, 7, -8):
        if B % tb == 0:
            return tb
    return B


def made_forward(x, cond, params, block_b=None):
    """x: (B, D) f32, cond: (B, C) f32. Returns (u (B, D), -sum(a) (B, 1))."""
    B, D = x.shape
    C = cond.shape[1]
    Hp = params['w1'].shape[1]

    if block_b is None:
        block_b = _pick_block_b(B)
    assert B % block_b == 0, "batch must be divisible by the batch tile"
    grid = (B // block_b,)

    row = lambda d: pl.BlockSpec((block_b, d), lambda i: (i, 0))      # batch-tiled
    full = lambda arr: pl.BlockSpec(arr.shape, lambda i: (0, 0))      # VMEM-resident

    weights = (params['w1'], params['b1'], params['wc'],
               params['w2'], params['b2'],
               params['w3m'], params['b3m'], params['w3a'], params['b3a'],
               params['wld'], params['bld'])

    flops = 2 * B * Hp * (D + C + Hp + 2 * D + 1)
    bytes_accessed = (int(x.nbytes) + int(cond.nbytes)
                      + sum(int(w.nbytes) for w in weights)
                      + B * D * 4 + B * 4)

    return pl.pallas_call(
        made_kernel,
        out_shape=(jax.ShapeDtypeStruct((B, D), jnp.float32),
                   jax.ShapeDtypeStruct((B, 1), jnp.float32)),
        grid=grid,
        in_specs=[row(D), row(C)] + [full(w) for w in weights],
        out_specs=(row(D), row(1)),
        compiler_params=pltpu.CompilerParams(
            dimension_semantics=("parallel",),        # shard batch across TCs (v7x)
            vmem_limit_bytes=32 * 1024 * 1024),       # safe on v5e/v6e/v7x
        cost_estimate=pl.CostEstimate(
            flops=flops, transcendentals=B * D, bytes_accessed=bytes_accessed),
    )(x, cond, *weights)


# ----------------------------------------------------------------------------
# Parameter construction: raw torch-layout params + folded kernel params
# ----------------------------------------------------------------------------
def init_params(key, num_inputs, num_hidden, num_cond_inputs, lane=128):
    D, H, C = num_inputs, num_hidden, num_cond_inputs
    ks = jax.random.split(key, 7)

    def uni(k, shape, fan_in):
        bound = 1.0 / jnp.sqrt(fan_in)
        return jax.random.uniform(k, shape, jnp.float32, -bound, bound)

    # Raw parameters in torch nn.Linear layout (out_features, in_features).
    w1 = uni(ks[0], (H, D), D)
    b1 = uni(ks[1], (1, H), D)
    wc = uni(ks[2], (H, C), C)          # conditional linear, bias=False
    w2 = uni(ks[3], (H, H), H)
    b2 = uni(ks[4], (1, H), H)
    w3 = uni(ks[5], (2 * D, H), H)
    b3 = uni(ks[6], (1, 2 * D), H)

    m1 = get_mask(D, H, D, mask_type='input')        # (H, D)
    m2 = get_mask(H, H, D)                           # (H, H)
    m3 = get_mask(H, 2 * D, D, mask_type='output')   # (2D, H)

    raw = (w1, m1, b1, wc, w2, m2, b2, w3, m3, b3)

    # Kernel params: masks folded, transposed to (in, out), hidden dim zero-
    # padded to a lane multiple, weights in bf16, biases in f32.
    Hp = ((H + lane - 1) // lane) * lane

    w1t = jnp.zeros((D, Hp), jnp.float32).at[:, :H].set((w1 * m1).T)
    b1p = jnp.zeros((1, Hp), jnp.float32).at[:, :H].set(b1)
    wct = jnp.zeros((C, Hp), jnp.float32).at[:, :H].set(wc.T)
    w2t = jnp.zeros((Hp, Hp), jnp.float32).at[:H, :H].set((w2 * m2).T)
    b2p = jnp.zeros((1, Hp), jnp.float32).at[:, :H].set(b2)

    w3masked = w3 * m3                                          # (2D, H)
    w3m = jnp.zeros((Hp, D), jnp.float32).at[:H, :].set(w3masked[:D, :].T)
    w3a = jnp.zeros((Hp, D), jnp.float32).at[:H, :].set(w3masked[D:, :].T)
    b3m = b3[:, :D]
    b3a = b3[:, D:]

    # Log-det folded into the MXU: ld = h @ (-sum_j W3a[:, j]) - sum(b3a)
    wld = -jnp.sum(w3a, axis=1, keepdims=True)                  # (Hp, 1)
    bld = -jnp.sum(b3a, axis=1, keepdims=True)                  # (1, 1)

    bf = lambda t: t.astype(jnp.bfloat16)
    params = dict(w1=bf(w1t), b1=b1p, wc=bf(wct), w2=bf(w2t), b2=b2p,
                  w3m=bf(w3m), b3m=b3m, w3a=bf(w3a), b3a=b3a,
                  wld=bf(wld), bld=bld)
    return params, raw


# ----------------------------------------------------------------------------
# Pure-JAX references
# ----------------------------------------------------------------------------
def made_ref_kernel_math(x, cond, p):
    """Same math as the kernel (folded, padded, bf16 weights) in plain JAX."""
    f32 = jnp.float32
    xb = x.astype(jnp.bfloat16)
    cb = cond.astype(jnp.bfloat16)
    h = (jnp.dot(xb, p['w1'], preferred_element_type=f32)
         + jnp.dot(cb, p['wc'], preferred_element_type=f32) + p['b1'])
    h = jnp.maximum(h, 0.0).astype(jnp.bfloat16)
    h = jnp.dot(h, p['w2'], preferred_element_type=f32) + p['b2']
    h = jnp.maximum(h, 0.0).astype(jnp.bfloat16)
    m = jnp.dot(h, p['w3m'], preferred_element_type=f32) + p['b3m']
    a = jnp.dot(h, p['w3a'], preferred_element_type=f32) + p['b3a']
    ld = jnp.dot(h, p['wld'], preferred_element_type=f32) + p['bld']
    return (x - m) * jnp.exp(-a), ld


def made_ref_f32(x, cond, raw):
    """Original MADE semantics in full f32 (un-folded torch-layout params)."""
    w1, m1, b1, wc, w2, m2, b2, w3, m3, b3 = raw
    h = x @ (w1 * m1).T + b1 + cond @ wc.T
    h = jnp.maximum(h, 0.0)
    h = h @ (w2 * m2).T + b2
    h = jnp.maximum(h, 0.0)
    out = h @ (w3 * m3).T + b3
    D = x.shape[1]
    m, a = out[:, :D], out[:, D:]
    return (x - m) * jnp.exp(-a), -jnp.sum(a, axis=-1, keepdims=True)


if __name__ == "__main__":
    # batch, num_inputs, num_hidden, num_cond_inputs
    B, D, H, C = 128, 8, 32, 4

    key = jax.random.PRNGKey(0)
    kx, kc, kp = jax.random.split(key, 3)
    x = jax.random.normal(kx, (B, D), jnp.float32)
    cond = jax.random.normal(kc, (B, C), jnp.float32)
    params, raw = init_params(kp, D, H, C)

    # block_b=64 -> grid=(2,) exercises the batch-parallel pipeline.
    u, logdet = made_forward(x, cond, params, block_b=64)
    jax.block_until_ready((u, logdet))

    # Tight check against identical (folded bf16) math.
    u_k, ld_k = made_ref_kernel_math(x, cond, params)
    assert jnp.allclose(u, u_k, atol=1e-3, rtol=1e-3)
    assert jnp.allclose(logdet, ld_k, atol=1e-3, rtol=1e-3)

    # Loose sanity check against the original f32 MADE semantics (bf16 weights).
    u_r, ld_r = made_ref_f32(x, cond, raw)
    assert jnp.allclose(u, u_r, atol=1e-1, rtol=1e-1)
    assert jnp.allclose(logdet, ld_r, atol=1e-1, rtol=1e-1)

    print("KERNEL_OK")
</pallas_src>

<mosaic_0001>
module attributes {stable_mosaic.version = 11 : i64} {
  func.func @made_kernel(%arg0: i32, %arg1: memref<64x8xf32, #tpu.memory_space<vmem>>, %arg2: memref<64x4xf32, #tpu.memory_space<vmem>>, %arg3: memref<8x128xbf16, #tpu.memory_space<vmem>>, %arg4: memref<1x128xf32, #tpu.memory_space<vmem>>, %arg5: memref<4x128xbf16, #tpu.memory_space<vmem>>, %arg6: memref<128x128xbf16, #tpu.memory_space<vmem>>, %arg7: memref<1x128xf32, #tpu.memory_space<vmem>>, %arg8: memref<128x8xbf16, #tpu.memory_space<vmem>>, %arg9: memref<1x8xf32, #tpu.memory_space<vmem>>, %arg10: memref<128x8xbf16, #tpu.memory_space<vmem>>, %arg11: memref<1x8xf32, #tpu.memory_space<vmem>>, %arg12: memref<128x1xbf16, #tpu.memory_space<vmem>>, %arg13: memref<1x1xf32, #tpu.memory_space<vmem>>, %arg14: memref<64x8xf32, #tpu.memory_space<vmem>>, %arg15: memref<64x1xf32, #tpu.memory_space<vmem>>) attributes {dimension_semantics = [#tpu.dimension_semantics<parallel>], iteration_bounds = array<i64: 2>, scalar_prefetch = 0 : i64, scratch_operands = 0 : i64, tpu.core_type = #tpu.core_type<tc>, window_params = [{transform_indices = @transform_0, window_bounds = array<i64: 64, 8>}, {transform_indices = @transform_1, window_bounds = array<i64: 64, 4>}, {pipeline_mode = #tpu.pipeline_mode<synchronous>, transform_indices = @transform_2, window_bounds = array<i64: 8, 128>}, {pipeline_mode = #tpu.pipeline_mode<synchronous>, transform_indices = @transform_3, window_bounds = array<i64: 1, 128>}, {pipeline_mode = #tpu.pipeline_mode<synchronous>, transform_indices = @transform_4, window_bounds = array<i64: 4, 128>}, {pipeline_mode = #tpu.pipeline_mode<synchronous>, transform_indices = @transform_5, window_bounds = array<i64: 128, 128>}, {pipeline_mode = #tpu.pipeline_mode<synchronous>, transform_indices = @transform_6, window_bounds = array<i64: 1, 128>}, {pipeline_mode = #tpu.pipeline_mode<synchronous>, transform_indices = @transform_7, window_bounds = array<i64: 128, 8>}, {pipeline_mode = #tpu.pipeline_mode<synchronous>, transform_indices = @transform_8, window_bounds = array<i64: 1, 8>}, {pipeline_mode = #tpu.pipeline_mode<synchronous>, transform_indices = @transform_9, window_bounds = array<i64: 128, 8>}, {pipeline_mode = #tpu.pipeline_mode<synchronous>, transform_indices = @transform_10, window_bounds = array<i64: 1, 8>}, {pipeline_mode = #tpu.pipeline_mode<synchronous>, transform_indices = @transform_11, window_bounds = array<i64: 128, 1>}, {pipeline_mode = #tpu.pipeline_mode<synchronous>, transform_indices = @transform_12, window_bounds = array<i64: 1, 1>}, {transform_indices = @transform_13, window_bounds = array<i64: 64, 8>}, {transform_indices = @transform_14, window_bounds = array<i64: 64, 1>}]} {
    %c0 = arith.constant 0 : index
    %c0_0 = arith.constant 0 : index
    %0 = vector.load %arg1[%c0, %c0_0] : memref<64x8xf32, #tpu.memory_space<vmem>>, vector<64x8xf32>
    %1 = arith.truncf %0 : vector<64x8xf32> to vector<64x8xbf16>
    %c0_1 = arith.constant 0 : index
    %c0_2 = arith.constant 0 : index
    %2 = vector.load %arg2[%c0_1, %c0_2] : memref<64x4xf32, #tpu.memory_space<vmem>>, vector<64x4xf32>
    %3 = arith.truncf %2 : vector<64x4xf32> to vector<64x4xbf16>
    %c0_3 = arith.constant 0 : index
    %c0_4 = arith.constant 0 : index
    %4 = vector.load %arg3[%c0_3, %c0_4] : memref<8x128xbf16, #tpu.memory_space<vmem>>, vector<8x128xbf16>
    %cst = arith.constant dense<0.000000e+00> : vector<64x128xf32>
    %5 = tpu.matmul %1, %4, %cst {dimension_numbers = #tpu.dot_dimension_numbers<[1], [0], [0], [1], [0, 0, 1, 1], [], []>} : vector<64x8xbf16>, vector<8x128xbf16>, vector<64x128xf32> -> vector<64x128xf32>
    %c0_5 = arith.constant 0 : index
    %c0_6 = arith.constant 0 : index
    %6 = vector.load %arg5[%c0_5, %c0_6] : memref<4x128xbf16, #tpu.memory_space<vmem>>, vector<4x128xbf16>
    %cst_7 = arith.constant dense<0.000000e+00> : vector<64x128xf32>
    %7 = tpu.matmul %3, %6, %cst_7 {dimension_numbers = #tpu.dot_dimension_numbers<[1], [0], [0], [1], [0, 0, 1, 1], [], []>} : vector<64x4xbf16>, vector<4x128xbf16>, vector<64x128xf32> -> vector<64x128xf32>
    %8 = arith.addf %5, %7 : vector<64x128xf32>
    %c0_8 = arith.constant 0 : index
    %c0_9 = arith.constant 0 : index
    %9 = vector.load %arg4[%c0_8, %c0_9] : memref<1x128xf32, #tpu.memory_space<vmem>>, vector<1x128xf32>
    %10 = vector.broadcast %9 : vector<1x128xf32> to vector<64x128xf32>
    %11 = arith.addf %8, %10 : vector<64x128xf32>
    %cst_10 = arith.constant 0.000000e+00 : f32
    %12 = vector.broadcast %cst_10 : f32 to vector<64x128xf32>
    %13 = arith.maximumf %11, %12 : vector<64x128xf32>
    %14 = arith.truncf %13 : vector<64x128xf32> to vector<64x128xbf16>
    %c0_11 = arith.constant 0 : index
    %c0_12 = arith.constant 0 : index
    %15 = vector.load %arg6[%c0_11, %c0_12] : memref<128x128xbf16, #tpu.memory_space<vmem>>, vector<128x128xbf16>
    %cst_13 = arith.constant dense<0.000000e+00> : vector<64x128xf32>
    %16 = tpu.matmul %14, %15, %cst_13 {dimension_numbers = #tpu.dot_dimension_numbers<[1], [0], [0], [1], [0, 0, 1, 1], [], []>} : vector<64x128xbf16>, vector<128x128xbf16>, vector<64x128xf32> -> vector<64x128xf32>
    %c0_14 = arith.constant 0 : index
    %c0_15 = arith.constant 0 : index
    %17 = vector.load %arg7[%c0_14, %c0_15] : memref<1x128xf32, #tpu.memory_space<vmem>>, vector<1x128xf32>
    %18 = vector.broadcast %17 : vector<1x128xf32> to vector<64x128xf32>
    %19 = arith.addf %16, %18 : vector<64x128xf32>
    %cst_16 = arith.constant 0.000000e+00 : f32
    %20 = vector.broadcast %cst_16 : f32 to vector<64x128xf32>
    %21 = arith.maximumf %19, %20 : vector<64x128xf32>
    %22 = arith.truncf %21 : vector<64x128xf32> to vector<64x128xbf16>
    %c0_17 = arith.constant 0 : index
    %c0_18 = arith.constant 0 : index
    %23 = vector.load %arg8[%c0_17, %c0_18] : memref<128x8xbf16, #tpu.memory_space<vmem>>, vector<128x8xbf16>
    %cst_19 = arith.constant dense<0.000000e+00> : vector<64x8xf32>
    %24 = tpu.matmul %22, %23, %cst_19 {dimension_numbers = #tpu.dot_dimension_numbers<[1], [0], [0], [1], [0, 0, 1, 1], [], []>} : vector<64x128xbf16>, vector<128x8xbf16>, vector<64x8xf32> -> vector<64x8xf32>
    %c0_20 = arith.constant 0 : index
    %c0_21 = arith.constant 0 : index
    %25 = vector.load %arg9[%c0_20, %c0_21] : memref<1x8xf32, #tpu.memory_space<vmem>>, vector<1x8xf32>
    %26 = vector.broadcast %25 : vector<1x8xf32> to vector<64x8xf32>
    %27 = arith.addf %24, %26 : vector<64x8xf32>
    %c0_22 = arith.constant 0 : index
    %c0_23 = arith.constant 0 : index
    %28 = vector.load %arg10[%c0_22, %c0_23] : memref<128x8xbf16, #tpu.memory_space<vmem>>, vector<128x8xbf16>
    %cst_24 = arith.constant dense<0.000000e+00> : vector<64x8xf32>
    %29 = tpu.matmul %22, %28, %cst_24 {dimension_numbers = #tpu.dot_dimension_numbers<[1], [0], [0], [1], [0, 0, 1, 1], [], []>} : vector<64x128xbf16>, vector<128x8xbf16>, vector<64x8xf32> -> vector<64x8xf32>
    %c0_25 = arith.constant 0 : index
    %c0_26 = arith.constant 0 : index
    %30 = vector.load %arg11[%c0_25, %c0_26] : memref<1x8xf32, #tpu.memory_space<vmem>>, vector<1x8xf32>
    %31 = vector.broadcast %30 : vector<1x8xf32> to vector<64x8xf32>
    %32 = arith.addf %29, %31 : vector<64x8xf32>
    %c0_27 = arith.constant 0 : index
    %c0_28 = arith.constant 0 : index
    %33 = vector.load %arg12[%c0_27, %c0_28] : memref<128x1xbf16, #tpu.memory_space<vmem>>, vector<128x1xbf16>
    %cst_29 = arith.constant dense<0.000000e+00> : vector<64x1xf32>
    %34 = tpu.matmul %22, %33, %cst_29 {dimension_numbers = #tpu.dot_dimension_numbers<[1], [0], [0], [1], [0, 0, 1, 1], [], []>} : vector<64x128xbf16>, vector<128x1xbf16>, vector<64x1xf32> -> vector<64x1xf32>
    %c0_30 = arith.constant 0 : index
    %c0_31 = arith.constant 0 : index
    %35 = vector.load %arg13[%c0_30, %c0_31] : memref<1x1xf32, #tpu.memory_space<vmem>>, vector<1x1xf32>
    %36 = vector.broadcast %35 : vector<1x1xf32> to vector<64x1xf32>
    %37 = arith.addf %34, %36 : vector<64x1xf32>
    %38 = arith.subf %0, %27 : vector<64x8xf32>
    %cst_32 = arith.constant 0.000000e+00 : f32
    %39 = vector.broadcast %cst_32 : f32 to vector<64x8xf32>
    %40 = arith.subf %39, %32 : vector<64x8xf32>
    %41 = math.exp %40 : vector<64x8xf32>
    %42 = arith.mulf %38, %41 : vector<64x8xf32>
    %c0_33 = arith.constant 0 : index
    %c0_34 = arith.constant 0 : index
    %43 = vector.load %arg14[%c0_33, %c0_34] : memref<64x8xf32, #tpu.memory_space<vmem>>, vector<64x8xf32>
    tpu.vector_store %arg14[%c0_33, %c0_34], %42 {strides = array<i32>} : memref<64x8xf32, #tpu.memory_space<vmem>>, vector<64x8xf32>,
    %c0_35 = arith.constant 0 : index
    %c0_36 = arith.constant 0 : index
    %44 = vector.load %arg15[%c0_35, %c0_36] : memref<64x1xf32, #tpu.memory_space<vmem>>, vector<64x1xf32>
    tpu.vector_store %arg15[%c0_35, %c0_36], %37 {strides = array<i32>} : memref<64x1xf32, #tpu.memory_space<vmem>>, vector<64x1xf32>,
    return
  }
  func.func @transform_0(%arg0: i32) -> (i32, i32) {
    %c0_i32 = arith.constant 0 : i32
    %c0_i32_0 = arith.constant 0 : i32
    return %arg0, %c0_i32 : i32, i32
  }
  func.func @transform_1(%arg0: i32) -> (i32, i32) {
    %c0_i32 = arith.constant 0 : i32
    %c0_i32_0 = arith.constant 0 : i32
    return %arg0, %c0_i32 : i32, i32
  }
  func.func @transform_2(%arg0: i32) -> (i32, i32) {
    %c0_i32 = arith.constant 0 : i32
    %c0_i32_0 = arith.constant 0 : i32
    %c0_i32_1 = arith.constant 0 : i32
    return %c0_i32, %c0_i32_0 : i32, i32
  }
  func.func @transform_3(%arg0: i32) -> (i32, i32) {
    %c0_i32 = arith.constant 0 : i32
    %c0_i32_0 = arith.constant 0 : i32
    %c0_i32_1 = arith.constant 0 : i32
    return %c0_i32, %c0_i32_0 : i32, i32
  }
  func.func @transform_4(%arg0: i32) -> (i32, i32) {
    %c0_i32 = arith.constant 0 : i32
    %c0_i32_0 = arith.constant 0 : i32
    %c0_i32_1 = arith.constant 0 : i32
    return %c0_i32, %c0_i32_0 : i32, i32
  }
  func.func @transform_5(%arg0: i32) -> (i32, i32) {
    %c0_i32 = arith.constant 0 : i32
    %c0_i32_0 = arith.constant 0 : i32
    %c0_i32_1 = arith.constant 0 : i32
    return %c0_i32, %c0_i32_0 : i32, i32
  }
  func.func @transform_6(%arg0: i32) -> (i32, i32) {
    %c0_i32 = arith.constant 0 : i32
    %c0_i32_0 = arith.constant 0 : i32
    %c0_i32_1 = arith.constant 0 : i32
    return %c0_i32, %c0_i32_0 : i32, i32
  }
  func.func @transform_7(%arg0: i32) -> (i32, i32) {
    %c0_i32 = arith.constant 0 : i32
    %c0_i32_0 = arith.constant 0 : i32
    %c0_i32_1 = arith.constant 0 : i32
    return %c0_i32, %c0_i32_0 : i32, i32
  }
  func.func @transform_8(%arg0: i32) -> (i32, i32) {
    %c0_i32 = arith.constant 0 : i32
    %c0_i32_0 = arith.constant 0 : i32
    %c0_i32_1 = arith.constant 0 : i32
    return %c0_i32, %c0_i32_0 : i32, i32
  }
  func.func @transform_9(%arg0: i32) -> (i32, i32) {
    %c0_i32 = arith.constant 0 : i32
    %c0_i32_0 = arith.constant 0 : i32
    %c0_i32_1 = arith.constant 0 : i32
    return %c0_i32, %c0_i32_0 : i32, i32
  }
  func.func @transform_10(%arg0: i32) -> (i32, i32) {
    %c0_i32 = arith.constant 0 : i32
    %c0_i32_0 = arith.constant 0 : i32
    %c0_i32_1 = arith.constant 0 : i32
    return %c0_i32, %c0_i32_0 : i32, i32
  }
  func.func @transform_11(%arg0: i32) -> (i32, i32) {
    %c0_i32 = arith.constant 0 : i32
    %c0_i32_0 = arith.constant 0 : i32
    %c0_i32_1 = arith.constant 0 : i32
    return %c0_i32, %c0_i32_0 : i32, i32
  }
  func.func @transform_12(%arg0: i32) -> (i32, i32) {
    %c0_i32 = arith.constant 0 : i32
    %c0_i32_0 = arith.constant 0 : i32
    %c0_i32_1 = arith.constant 0 : i32
    return %c0_i32, %c0_i32_0 : i32, i32
  }
  func.func @transform_13(%arg0: i32) -> (i32, i32) {
    %c0_i32 = arith.constant 0 : i32
    %c0_i32_0 = arith.constant 0 : i32
    return %arg0, %c0_i32 : i32, i32
  }
  func.func @transform_14(%arg0: i32) -> (i32, i32) {
    %c0_i32 = arith.constant 0 : i32
    %c0_i32_0 = arith.constant 0 : i32
    return %arg0, %c0_i32 : i32, i32
  }
}

</mosaic_0001>

<llo_original>
// kernel: tpu_custom_call.1
$region0: #{tpu_custom_call.1}
  #allocation0 [shape = 'u32[]', space=smem, size = 0x4, offset = 0x4, fixed_abs, tag = 'smem constant byte address 0x4 - core index']
  #allocation1 [shape = 'u32[144,128]{1,0:T(1,128)}', space=vmem, size = 0x12000, scoped, tag = 'internal scratch']
  #allocation2 [shape = 'f32[1,1]{1,0:T(1,128)S(1)}', space=vmem, size = 0x200, scoped, tag = 'scoped memory for tpu_custom_call.1']
  %s0 = inlined_call_operand.vmem [shape: f32[128,8], index: 0, kind: input, shape index: {}]
  %s1 = inlined_call_operand.vmem [shape: f32[128,4], index: 1, kind: input, shape index: {}]
  %s2 = inlined_call_operand.vmem [shape: bf16[8,128], index: 2, kind: input, shape index: {}]
  %s3 = inlined_call_operand.vmem [shape: f32[1,128], index: 3, kind: input, shape index: {}]
  %s4 = inlined_call_operand.vmem [shape: bf16[4,128], index: 4, kind: input, shape index: {}]
  %s5 = inlined_call_operand.vmem [shape: bf16[128,128], index: 5, kind: input, shape index: {}]
  %s6 = inlined_call_operand.vmem [shape: f32[1,128], index: 6, kind: input, shape index: {}]
  %s7 = inlined_call_operand.vmem [shape: bf16[128,8], index: 7, kind: input, shape index: {}]
  %s8 = inlined_call_operand.vmem [shape: f32[1,8], index: 8, kind: input, shape index: {}]
  %s9 = inlined_call_operand.vmem [shape: bf16[128,8], index: 9, kind: input, shape index: {}]
  %s10 = inlined_call_operand.vmem [shape: f32[1,8], index: 10, kind: input, shape index: {}]
  %s11 = inlined_call_operand.vmem [shape: bf16[128,1], index: 11, kind: input, shape index: {}]
  %s12 = inlined_call_operand.<no memory space> [shape: f32[1,1], index: 12, kind: input, shape index: {}]
  %s13 = inlined_call_operand.vmem [shape: f32[128,8], index: 13, kind: output, shape index: {0}]
  %s14 = inlined_call_operand.vmem [shape: f32[128,1], index: 14, kind: output, shape index: {1}]
  %15 = xla_tuple %s13, %s14
  %s16 = sld [smem:[#allocation0]]
  $region93: #{tpu_custom_call.1} parent=0
    _
  %s18 = ssub.s32 1, %s16
  %s19 = scalar_select 0, %s18, %s16
  %v20 = vstv %s12
  %21 = vst [vmem:[#allocation2] sm:$0x1] %v20
  loop: start=0, step=1, limit=4
  $region2: #{tpu_custom_call.1} parent=0 // loop_pre_header
    _
  $region3: #{tpu_custom_call.1} parent=0 // loop_header
    %s23 = sphi 0, %s27
    %p24 = scmp.ge.s32.totalorder %s23, 4
    %s33 = sphi 0, %s35
    %s36 = sphi 0, %s33
    %s37 = sphi 0, %s36
    %s53 = sphi 0, %s37
    %s59 = sphi 0, %s61
    %s62 = sphi 0, %s59
    %s63 = sphi 0, %s62
    %s79 = sphi 0, %s63
    %s83 = sphi 0, %s83
    %s85 = sphi 0, %s83
    %s86 = sphi 0, %s85
    %s100 = sphi 0, %s86
    %s104 = sphi 0, %s104
    %s106 = sphi 0, %s104
    %s107 = sphi 0, %s106
    %s121 = sphi 0, %s107
    %s125 = sphi 0, %s125
    %s127 = sphi 0, %s125
    %s128 = sphi 0, %s127
    %s142 = sphi 0, %s128
    %s146 = sphi 0, %s146
    %s148 = sphi 0, %s146
    %s149 = sphi 0, %s148
    %s163 = sphi 0, %s149
    %s167 = sphi 0, %s167
    %s169 = sphi 0, %s167
    %s170 = sphi 0, %s169
    %s184 = sphi 0, %s170
    %s188 = sphi 0, %s188
    %s190 = sphi 0, %s188
    %s191 = sphi 0, %s190
    %s205 = sphi 0, %s191
    %s209 = sphi 0, %s209
    %s211 = sphi 0, %s209
    %s212 = sphi 0, %s211
    %s226 = sphi 0, %s212
    %s230 = sphi 0, %s230
    %s232 = sphi 0, %s230
    %s233 = sphi 0, %s232
    %s247 = sphi 0, %s233
    %s251 = sphi 0, %s251
    %s253 = sphi 0, %s251
    %s254 = sphi 0, %s253
    %s268 = sphi 0, %s254
    %s272 = sphi 0, %s272
    %s274 = sphi 0, %s272
    %s275 = sphi 0, %s274
    %s289 = sphi 0, %s275
    %s293 = sphi 0, %s293
    %s295 = sphi 0, %s293
    %s296 = sphi 0, %s295
    %s310 = sphi 0, %s296
    %s316 = sphi 0, %s318
    %s319 = sphi 0, %s316
    %s320 = sphi 0, %s319
    %s336 = sphi 0, %s320
    %s342 = sphi 0, %s344
    %s345 = sphi 0, %s342
    %s346 = sphi 0, %s345
    %s362 = sphi 0, %s346
  $region4: #{tpu_custom_call.1} parent=0 // loop_header_branch
    %26 = sbr.rel (%p24) target = $region8
  $region5: #{tpu_custom_call.1} parent=0 // loop_body
    %s28 = ssub.s32 %s23, 1
    %s29 = ssub.s32 %s23, 2
    %s30 = sadd.s32 %s23, 1
    %s31 = ssub.s32 %s23, %s30
    %p32 = scmp.eq.s32.totalorder %s31, 0
    %s34 = sadd.s32 %s33, 1
    %s35 = scalar_select %p32, %s33, %s34
    %p38 = pneg %p32
    %p39 = scmp.eq.s32.totalorder %s23, 1
    %p40 = por %p38, %p39
    %p41 = scmp.ne.s32.totalorder %s33, %s36
    %p42 = scmp.eq.s32.totalorder %s23, 0
    %p43 = por %p41, %p42
    %p44 = scmp.ne.s32.totalorder %s33, %s36
    %p45 = scmp.eq.s32.totalorder %s28, 1
    %p46 = por %p44, %p45
    %p47 = scmp.ne.s32.totalorder %s36, %s37
    %p48 = scmp.eq.s32.totalorder %s28, 0
    %p49 = por %p47, %p48
    %p50 = scmp.ne.s32.totalorder %s36, %s37
    %p51 = scmp.eq.s32.totalorder %s29, 1
    %p52 = por %p50, %p51
    %p54 = scmp.ne.s32.totalorder %s37, %s53
    %p55 = scmp.eq.s32.totalorder %s29, 0
    %p56 = por %p54, %p55
    %s57 = ssub.s32 %s23, %s30
    %p58 = scmp.eq.s32.totalorder %s57, 0
    %s60 = sadd.s32 %s59, 1
    %s61 = scalar_select %p58, %s59, %s60
    %p64 = pneg %p58
    %p65 = scmp.eq.s32.totalorder %s23, 1
    %p66 = por %p64, %p65
    %p67 = scmp.ne.s32.totalorder %s59, %s62
    %p68 = scmp.eq.s32.totalorder %s23, 0
    %p69 = por %p67, %p68
    %p70 = scmp.ne.s32.totalorder %s59, %s62
    %p71 = scmp.eq.s32.totalorder %s28, 1
    %p72 = por %p70, %p71
    %p73 = scmp.ne.s32.totalorder %s62, %s63
    %p74 = scmp.eq.s32.totalorder %s28, 0
    %p75 = por %p73, %p74
    %p76 = scmp.ne.s32.totalorder %s62, %s63
    %p77 = scmp.eq.s32.totalorder %s29, 1
    %p78 = por %p76, %p77
    %p80 = scmp.ne.s32.totalorder %s63, %s79
    %p81 = scmp.eq.s32.totalorder %s29, 0
    %p82 = por %p80, %p81
    %s84 = sadd.s32 %s83, 1
    %p87 = scmp.eq.s32.totalorder %s23, 1
    %p88 = scmp.ne.s32.totalorder %s83, %s85
    %p89 = scmp.eq.s32.totalorder %s23, 0
    %p90 = por %p88, %p89
    %p91 = scmp.ne.s32.totalorder %s83, %s85
    %p92 = scmp.eq.s32.totalorder %s28, 1
    %p93 = por %p91, %p92
    %p94 = scmp.ne.s32.totalorder %s85, %s86
    %p95 = scmp.eq.s32.totalorder %s28, 0
    %p96 = por %p94, %p95
    %p97 = scmp.ne.s32.totalorder %s85, %s86
    %p98 = scmp.eq.s32.totalorder %s29, 1
    %p99 = por %p97, %p98
    %p101 = scmp.ne.s32.totalorder %s86, %s100
    %p102 = scmp.eq.s32.totalorder %s29, 0
    %p103 = por %p101, %p102
    %s105 = sadd.s32 %s104, 1
    %p108 = scmp.eq.s32.totalorder %s23, 1
    %p109 = scmp.ne.s32.totalorder %s104, %s106
    %p110 = scmp.eq.s32.totalorder %s23, 0
    %p111 = por %p109, %p110
    %p112 = scmp.ne.s32.totalorder %s104, %s106
    %p113 = scmp.eq.s32.totalorder %s28, 1
    %p114 = por %p112, %p113
    %p115 = scmp.ne.s32.totalorder %s106, %s107
    %p116 = scmp.eq.s32.totalorder %s28, 0
    %p117 = por %p115, %p116
    %p118 = scmp.ne.s32.totalorder %s106, %s107
    %p119 = scmp.eq.s32.totalorder %s29, 1
    %p120 = por %p118, %p119
    %p122 = scmp.ne.s32.totalorder %s107, %s121
    %p123 = scmp.eq.s32.totalorder %s29, 0
    %p124 = por %p122, %p123
    %s126 = sadd.s32 %s125, 1
    %p129 = scmp.eq.s32.totalorder %s23, 1
    %p130 = scmp.ne.s32.totalorder %s125, %s127
    %p131 = scmp.eq.s32.totalorder %s23, 0
    %p132 = por %p130, %p131
    %p133 = scmp.ne.s32.totalorder %s125, %s127
    %p134 = scmp.eq.s32.totalorder %s28, 1
    %p135 = por %p133, %p134
    %p136 = scmp.ne.s32.totalorder %s127, %s128
    %p137 = scmp.eq.s32.totalorder %s28, 0
    %p138 = por %p136, %p137
    %p139 = scmp.ne.s32.totalorder %s127, %s128
    %p140 = scmp.eq.s32.totalorder %s29, 1
    %p141 = por %p139, %p140
    %p143 = scmp.ne.s32.totalorder %s128, %s142
    %p144 = scmp.eq.s32.totalorder %s29, 0
    %p145 = por %p143, %p144
    %s147 = sadd.s32 %s146, 1
    %p150 = scmp.eq.s32.totalorder %s23, 1
    %p151 = scmp.ne.s32.totalorder %s146, %s148
    %p152 = scmp.eq.s32.totalorder %s23, 0
    %p153 = por %p151, %p152
    %p154 = scmp.ne.s32.totalorder %s146, %s148
    %p155 = scmp.eq.s32.totalorder %s28, 1
    %p156 = por %p154, %p155
    %p157 = scmp.ne.s32.totalorder %s148, %s149
    %p158 = scmp.eq.s32.totalorder %s28, 0
    %p159 = por %p157, %p158
    %p160 = scmp.ne.s32.totalorder %s148, %s149
    %p161 = scmp.eq.s32.totalorder %s29, 1
    %p162 = por %p160, %p161
    %p164 = scmp.ne.s32.totalorder %s149, %s163
    %p165 = scmp.eq.s32.totalorder %s29, 0
    %p166 = por %p164, %p165
    %s168 = sadd.s32 %s167, 1
    %p171 = scmp.eq.s32.totalorder %s23, 1
    %p172 = scmp.ne.s32.totalorder %s167, %s169
    %p173 = scmp.eq.s32.totalorder %s23, 0
    %p174 = por %p172, %p173
    %p175 = scmp.ne.s32.totalorder %s167, %s169
    %p176 = scmp.eq.s32.totalorder %s28, 1
    %p177 = por %p175, %p176
    %p178 = scmp.ne.s32.totalorder %s169, %s170
    %p179 = scmp.eq.s32.totalorder %s28, 0
    %p180 = por %p178, %p179
    %p181 = scmp.ne.s32.totalorder %s169, %s170
    %p182 = scmp.eq.s32.totalorder %s29, 1
    %p183 = por %p181, %p182
    %p185 = scmp.ne.s32.totalorder %s170, %s184
    %p186 = scmp.eq.s32.totalorder %s29, 0
    %p187 = por %p185, %p186
    %s189 = sadd.s32 %s188, 1
    %p192 = scmp.eq.s32.totalorder %s23, 1
    %p193 = scmp.ne.s32.totalorder %s188, %s190
    %p194 = scmp.eq.s32.totalorder %s23, 0
    %p195 = por %p193, %p194
    %p196 = scmp.ne.s32.totalorder %s188, %s190
    %p197 = scmp.eq.s32.totalorder %s28, 1
    %p198 = por %p196, %p197
    %p199 = scmp.ne.s32.totalorder %s190, %s191
    %p200 = scmp.eq.s32.totalorder %s28, 0
    %p201 = por %p199, %p200
    %p202 = scmp.ne.s32.totalorder %s190, %s191
    %p203 = scmp.eq.s32.totalorder %s29, 1
    %p204 = por %p202, %p203
    %p206 = scmp.ne.s32.totalorder %s191, %s205
    %p207 = scmp.eq.s32.totalorder %s29, 0
    %p208 = por %p206, %p207
    %s210 = sadd.s32 %s209, 1
    %p213 = scmp.eq.s32.totalorder %s23, 1
    %p214 = scmp.ne.s32.totalorder %s209, %s211
    %p215 = scmp.eq.s32.totalorder %s23, 0
    %p216 = por %p214, %p215
    %p217 = scmp.ne.s32.totalorder %s209, %s211
    %p218 = scmp.eq.s32.totalorder %s28, 1
    %p219 = por %p217, %p218
    %p220 = scmp.ne.s32.totalorder %s211, %s212
    %p221 = scmp.eq.s32.totalorder %s28, 0
    %p222 = por %p220, %p221
    %p223 = scmp.ne.s32.totalorder %s211, %s212
    %p224 = scmp.eq.s32.totalorder %s29, 1
    %p225 = por %p223, %p224
    %p227 = scmp.ne.s32.totalorder %s212, %s226
    %p228 = scmp.eq.s32.totalorder %s29, 0
    %p229 = por %p227, %p228
    %s231 = sadd.s32 %s230, 1
    %p234 = scmp.eq.s32.totalorder %s23, 1
    %p235 = scmp.ne.s32.totalorder %s230, %s232
    %p236 = scmp.eq.s32.totalorder %s23, 0
    %p237 = por %p235, %p236
    %p238 = scmp.ne.s32.totalorder %s230, %s232
    %p239 = scmp.eq.s32.totalorder %s28, 1
    %p240 = por %p238, %p239
    %p241 = scmp.ne.s32.totalorder %s232, %s233
    %p242 = scmp.eq.s32.totalorder %s28, 0
    %p243 = por %p241, %p242
    %p244 = scmp.ne.s32.totalorder %s232, %s233
    %p245 = scmp.eq.s32.totalorder %s29, 1
    %p246 = por %p244, %p245
    %p248 = scmp.ne.s32.totalorder %s233, %s247
    %p249 = scmp.eq.s32.totalorder %s29, 0
    %p250 = por %p248, %p249
    %s252 = sadd.s32 %s251, 1
    %p255 = scmp.eq.s32.totalorder %s23, 1
    %p256 = scmp.ne.s32.totalorder %s251, %s253
    %p257 = scmp.eq.s32.totalorder %s23, 0
    %p258 = por %p256, %p257
    %p259 = scmp.ne.s32.totalorder %s251, %s253
    %p260 = scmp.eq.s32.totalorder %s28, 1
    %p261 = por %p259, %p260
    %p262 = scmp.ne.s32.totalorder %s253, %s254
    %p263 = scmp.eq.s32.totalorder %s28, 0
    %p264 = por %p262, %p263
    %p265 = scmp.ne.s32.totalorder %s253, %s254
    %p266 = scmp.eq.s32.totalorder %s29, 1
    %p267 = por %p265, %p266
    %p269 = scmp.ne.s32.totalorder %s254, %s268
    %p270 = scmp.eq.s32.totalorder %s29, 0
    %p271 = por %p269, %p270
    %s273 = sadd.s32 %s272, 1
    %p276 = scmp.eq.s32.totalorder %s23, 1
    %p277 = scmp.ne.s32.totalorder %s272, %s274
    %p278 = scmp.eq.s32.totalorder %s23, 0
    %p279 = por %p277, %p278
    %p280 = scmp.ne.s32.totalorder %s272, %s274
    %p281 = scmp.eq.s32.totalorder %s28, 1
    %p282 = por %p280, %p281
    %p283 = scmp.ne.s32.totalorder %s274, %s275
    %p284 = scmp.eq.s32.totalorder %s28, 0
    %p285 = por %p283, %p284
    %p286 = scmp.ne.s32.totalorder %s274, %s275
    %p287 = scmp.eq.s32.totalorder %s29, 1
    %p288 = por %p286, %p287
    %p290 = scmp.ne.s32.totalorder %s275, %s289
    %p291 = scmp.eq.s32.totalorder %s29, 0
    %p292 = por %p290, %p291
    %s294 = sadd.s32 %s293, 1
    %p297 = scmp.eq.s32.totalorder %s23, 1
    %p298 = scmp.ne.s32.totalorder %s293, %s295
    %p299 = scmp.eq.s32.totalorder %s23, 0
    %p300 = por %p298, %p299
    %p301 = scmp.ne.s32.totalorder %s293, %s295
    %p302 = scmp.eq.s32.totalorder %s28, 1
    %p303 = por %p301, %p302
    %p304 = scmp.ne.s32.totalorder %s295, %s296
    %p305 = scmp.eq.s32.totalorder %s28, 0
    %p306 = por %p304, %p305
    %p307 = scmp.ne.s32.totalorder %s295, %s296
    %p308 = scmp.eq.s32.totalorder %s29, 1
    %p309 = por %p307, %p308
    %p311 = scmp.ne.s32.totalorder %s296, %s310
    %p312 = scmp.eq.s32.totalorder %s29, 0
    %p313 = por %p311, %p312
    %s314 = ssub.s32 %s23, %s30
    %p315 = scmp.eq.s32.totalorder %s314, 0
    %s317 = sadd.s32 %s316, 1
    %s318 = scalar_select %p315, %s316, %s317
    %p321 = pneg %p315
    %p322 = scmp.eq.s32.totalorder %s23, 1
    %p323 = por %p321, %p322
    %p324 = scmp.ne.s32.totalorder %s316, %s319
    %p325 = scmp.eq.s32.totalorder %s23, 0
    %p326 = por %p324, %p325
    %p327 = scmp.ne.s32.totalorder %s316, %s319
    %p328 = scmp.eq.s32.totalorder %s28, 1
    %p329 = por %p327, %p328
    %p330 = scmp.ne.s32.totalorder %s319, %s320
    %p331 = scmp.eq.s32.totalorder %s28, 0
    %p332 = por %p330, %p331
    %p333 = scmp.ne.s32.totalorder %s319, %s320
    %p334 = scmp.eq.s32.totalorder %s29, 1
    %p335 = por %p333, %p334
    %p337 = scmp.ne.s32.totalorder %s320, %s336
    %p338 = scmp.eq.s32.totalorder %s29, 0
    %p339 = por %p337, %p338
    %s340 = ssub.s32 %s23, %s30
    %p341 = scmp.eq.s32.totalorder %s340, 0
    %s343 = sadd.s32 %s342, 1
    %s344 = scalar_select %p341, %s342, %s343
    %p347 = pneg %p341
    %p348 = scmp.eq.s32.totalorder %s23, 1
    %p349 = por %p347, %p348
    %p350 = scmp.ne.s32.totalorder %s342, %s345
    %p351 = scmp.eq.s32.totalorder %s23, 0
    %p352 = por %p350, %p351
    %p353 = scmp.ne.s32.totalorder %s342, %s345
    %p354 = scmp.eq.s32.totalorder %s28, 1
    %p355 = por %p353, %p354
    %p356 = scmp.ne.s32.totalorder %s345, %s346
    %p357 = scmp.eq.s32.totalorder %s28, 0
    %p358 = por %p356, %p357
    %p359 = scmp.ne.s32.totalorder %s345, %s346
    %p360 = scmp.eq.s32.totalorder %s29, 1
    %p361 = por %p359, %p360
    %p363 = scmp.ne.s32.totalorder %s346, %s362
    %p364 = scmp.eq.s32.totalorder %s29, 0
    %p365 = por %p363, %p364
    %p366 = scmp.le.s32.totalorder 1, %s23
    %p367 = scmp.lt.s32.totalorder %s23, 3
    %p368 = pnand %p366, %p367
    %p369 = pneg %p368
    // Predicated region
    $region9: #{tpu_custom_call.1} parent=5 // pred_check
      _
    $region10: #{tpu_custom_call.1} parent=5 // pred_check_branch
      %371 = sbr.rel (%p368) target = $region12
    $region11: #{tpu_custom_call.1} parent=5 // pred_region
      %s372 = ssub.s32 %s23, 1
      // Predicated region
      $region13: #{tpu_custom_call.1} parent=11 // pred_check
        %p373 = pneg %p96
      $region14: #{tpu_custom_call.1} parent=11 // pred_check_branch
        %375 = sbr.rel (%p373) target = $region16
      $region15: #{tpu_custom_call.1} parent=11 // pred_region
        _
      $region16: #{tpu_custom_call.1} parent=11 // pred_fallthru
        _
      // Predicated region
      $region17: #{tpu_custom_call.1} parent=11 // pred_check
        %p376 = pneg %p117
      $region18: #{tpu_custom_call.1} parent=11 // pred_check_branch
        %378 = sbr.rel (%p376) target = $region20
      $region19: #{tpu_custom_call.1} parent=11 // pred_region
        _
      $region20: #{tpu_custom_call.1} parent=11 // pred_fallthru
        _
      // Predicated region
      $region21: #{tpu_custom_call.1} parent=11 // pred_check
        %p379 = pneg %p138
      $region22: #{tpu_custom_call.1} parent=11 // pred_check_branch
        %381 = sbr.rel (%p379) target = $region24
      $region23: #{tpu_custom_call.1} parent=11 // pred_region
        _
      $region24: #{tpu_custom_call.1} parent=11 // pred_fallthru
        _
      // Predicated region
      $region25: #{tpu_custom_call.1} parent=11 // pred_check
        %p382 = pneg %p159
      $region26: #{tpu_custom_call.1} parent=11 // pred_check_branch
        %384 = sbr.rel (%p382) target = $region28
      $region27: #{tpu_custom_call.1} parent=11 // pred_region
        _
      $region28: #{tpu_custom_call.1} parent=11 // pred_fallthru
        _
      // Predicated region
      $region29: #{tpu_custom_call.1} parent=11 // pred_check
        %p385 = pneg %p180
      $region30: #{tpu_custom_call.1} parent=11 // pred_check_branch
        %387 = sbr.rel (%p385) target = $region32
      $region31: #{tpu_custom_call.1} parent=11 // pred_region
        _
      $region32: #{tpu_custom_call.1} parent=11 // pred_fallthru
        _
      // Predicated region
      $region33: #{tpu_custom_call.1} parent=11 // pred_check
        %p388 = pneg %p201
      $region34: #{tpu_custom_call.1} parent=11 // pred_check_branch
        %390 = sbr.rel (%p388) target = $region36
      $region35: #{tpu_custom_call.1} parent=11 // pred_region
        _
      $region36: #{tpu_custom_call.1} parent=11 // pred_fallthru
        _
      // Predicated region
      $region37: #{tpu_custom_call.1} parent=11 // pred_check
        %p391 = pneg %p222
      $region38: #{tpu_custom_call.1} parent=11 // pred_check_branch
        %393 = sbr.rel (%p391) target = $region40
      $region39: #{tpu_custom_call.1} parent=11 // pred_region
        _
      $region40: #{tpu_custom_call.1} parent=11 // pred_fallthru
        _
      // Predicated region
      $region41: #{tpu_custom_call.1} parent=11 // pred_check
        %p394 = pneg %p243
      $region42: #{tpu_custom_call.1} parent=11 // pred_check_branch
        %396 = sbr.rel (%p394) target = $region44
      $region43: #{tpu_custom_call.1} parent=11 // pred_region
        _
      $region44: #{tpu_custom_call.1} parent=11 // pred_fallthru
        _
      // Predicated region
      $region45: #{tpu_custom_call.1} parent=11 // pred_check
        %p397 = pneg %p264
      $region46: #{tpu_custom_call.1} parent=11 // pred_check_branch
        %399 = sbr.rel (%p397) target = $region48
      $region47: #{tpu_custom_call.1} parent=11 // pred_region
        _
      $region48: #{tpu_custom_call.1} parent=11 // pred_fallthru
        _
      // Predicated region
      $region49: #{tpu_custom_call.1} parent=11 // pred_check
        %p400 = pneg %p285
      $region50: #{tpu_custom_call.1} parent=11 // pred_check_branch
        %402 = sbr.rel (%p400) target = $region52
      $region51: #{tpu_custom_call.1} parent=11 // pred_region
        _
      $region52: #{tpu_custom_call.1} parent=11 // pred_fallthru
        _
      // Predicated region
      $region53: #{tpu_custom_call.1} parent=11 // pred_check
        %p403 = pneg %p306
      $region54: #{tpu_custom_call.1} parent=11 // pred_check_branch
        %405 = sbr.rel (%p403) target = $region56
      $region55: #{tpu_custom_call.1} parent=11 // pred_region
        _
      $region56: #{tpu_custom_call.1} parent=11 // pred_fallthru
        _
    $region12: #{tpu_custom_call.1} parent=5 // pred_fallthru
      _
    %p406 = scmp.lt.s32.totalorder %s23, 2
    // Predicated region
    $region57: #{tpu_custom_call.1} parent=5 // pred_check
      %p407 = pneg %p406
    $region58: #{tpu_custom_call.1} parent=5 // pred_check_branch
      %409 = sbr.rel (%p407) target = $region60
    $region59: #{tpu_custom_call.1} parent=5 // pred_region
      // Predicated region
      $region61: #{tpu_custom_call.1} parent=59 // pred_check
        %p410 = pneg %p43
      $region62: #{tpu_custom_call.1} parent=59 // pred_check_branch
        %412 = sbr.rel (%p410) target = $region64
      $region63: #{tpu_custom_call.1} parent=59 // pred_region
        %s413 = smul.u32 8, %s23
        %p414 = scmp.lt.s32.totalorder %s413, 15
        %s415 = scalar_select %p414, %s413, 15
        %s416 = smul.addr %s415, 8
        %s417 = scalar_lea.vmem %s0, %s416
        %s418 = smul.u32 8, %s23
      $region64: #{tpu_custom_call.1} parent=59 // pred_fallthru
        _
      // Predicated region
      $region65: #{tpu_custom_call.1} parent=59 // pred_check
        %p419 = pneg %p69
      $region66: #{tpu_custom_call.1} parent=59 // pred_check_branch
        %421 = sbr.rel (%p419) target = $region68
      $region67: #{tpu_custom_call.1} parent=59 // pred_region
        %s422 = smul.u32 8, %s23
        %p423 = scmp.lt.s32.totalorder %s422, 15
        %s424 = scalar_select %p423, %s422, 15
        %s425 = smul.addr %s424, 8
        %s426 = scalar_lea.vmem %s1, %s425
        %s427 = smul.u32 8, %s23
      $region68: #{tpu_custom_call.1} parent=59 // pred_fallthru
        _
    $region60: #{tpu_custom_call.1} parent=5 // pred_fallthru
      _
    %p428 = scmp.le.s32.totalorder 1, %s23
    %p429 = scmp.lt.s32.totalorder %s23, 3
    %p430 = pnand %p428, %p429
    %p431 = pneg %p430
    // Predicated region
    $region69: #{tpu_custom_call.1} parent=5 // pred_check
      _
    $region70: #{tpu_custom_call.1} parent=5 // pred_check_branch
      %433 = sbr.rel (%p430) target = $region72
    $region71: #{tpu_custom_call.1} parent=5 // pred_region
      %s434 = ssub.s32 %s23, 1
      %s435 = smul.u32 8, %s28
      %p436 = scmp.lt.s32.totalorder %s435, 15
      %s437 = scalar_select %p436, %s435, 15
      %s438 = smul.addr %s437, 8
      %s439 = scalar_lea.vmem %s0, %s438
      %p440 = pneg %p49
      %p441 = pneg %p46
      %s442 = smul.u32 8, %s28
      %p443 = scmp.lt.s32.totalorder %s442, 15
      %s444 = scalar_select %p443, %s442, 15
      %s445 = smul.addr %s444, 8
      %s446 = scalar_lea.vmem %s1, %s445
      %p447 = pneg %p75
      %p448 = pneg %p72
      %p449 = pneg %p96
      %p450 = pneg %p93
      %p451 = pneg %p117
      %p452 = pneg %p114
      %p453 = pneg %p138
      %p454 = pneg %p135
      %p455 = pneg %p159
      %p456 = pneg %p156
      %p457 = pneg %p180
      %p458 = pneg %p177
      %p459 = pneg %p201
      %p460 = pneg %p198
      %p461 = pneg %p222
      %p462 = pneg %p219
      %p463 = pneg %p243
      %p464 = pneg %p240
      %p465 = pneg %p264
      %p466 = pneg %p261
      %p467 = pneg %p285
      %p468 = pneg %p282
      %p469 = pneg %p306
      %p470 = pneg %p303
      %p471 = pneg %p332
      %p472 = pneg %p329
      %s473 = smul.u32 8, %s28
      %p474 = scmp.lt.s32.totalorder %s473, 15
      %s475 = scalar_select %p474, %s473, 15
      %s476 = smul.addr %s475, 8
      %s477 = scalar_lea.vmem %s13, %s476
      %p478 = pneg %p358
      %p479 = pneg %p355
      %s480 = smul.u32 8, %s28
      %p481 = scmp.lt.s32.totalorder %s480, 15
      %s482 = scalar_select %p481, %s480, 15
      %s483 = smul.addr %s482, 8
      %s484 = scalar_lea.vmem %s14, %s483
      %s485 = smul.u32 8, %s28
      %p486 = scmp.lt.s32.totalorder %s485, 15
      %s487 = scalar_select %p486, %s485, 15
      %s488 = smul.addr %s487, 8
      %s489 = scalar_lea.vmem %s0, %s488
      %s490 = smul.u32 8, %s28
      %s491 = smul.u32 8, %s28
      %p492 = scmp.lt.s32.totalorder %s491, 15
      %s493 = scalar_select %p492, %s491, 15
      %s494 = smul.addr %s493, 8
      %s495 = scalar_lea.vmem %s1, %s494
      %s496 = smul.u32 8, %s28
      %s497 = smul.u32 8, %s28
      %p498 = scmp.lt.s32.totalorder %s497, 15
      %s499 = scalar_select %p498, %s497, 15
      %s500 = smul.addr %s499, 8
      %s501 = scalar_lea.vmem %s13, %s500
      %s502 = smul.u32 8, %s28
      %s503 = smul.u32 8, %s28
      %p504 = scmp.lt.s32.totalorder %s503, 15
      %s505 = scalar_select %p504, %s503, 15
      %s506 = smul.addr %s505, 8
      %s507 = scalar_lea.vmem %s14, %s506
      %s508 = smul.u32 8, %s28
      %v510 = vld [vmem:[%s489] sm:$0xff]
      %v511 = vld [vmem:[%s489 + $0x8] sm:$0xff]
      %v512 = vld [vmem:[%s489 + $0x10] sm:$0xff]
      %v513 = vld [vmem:[%s489 + $0x18] sm:$0xff]
      %v514 = vld [vmem:[%s489 + $0x20] sm:$0xff]
      %v515 = vld [vmem:[%s489 + $0x28] sm:$0xff]
      %v516 = vld [vmem:[%s489 + $0x30] sm:$0xff]
      %v517 = vld [vmem:[%s489 + $0x38] sm:$0xff]
      %v518 = vpack.c.bf16 %v511, %v510
      %v519 = vpack.c.bf16 %v513, %v512
      %v520 = vpack.c.bf16 %v515, %v514
      %v521 = vpack.c.bf16 %v517, %v516
      %v522 = vld [vmem:[%s495] sm:$0xff]
      %v523 = vld [vmem:[%s495 + $0x8] sm:$0xff]
      %v524 = vld [vmem:[%s495 + $0x10] sm:$0xff]
      %v525 = vld [vmem:[%s495 + $0x18] sm:$0xff]
      %v526 = vld [vmem:[%s495 + $0x20] sm:$0xff]
      %v527 = vld [vmem:[%s495 + $0x28] sm:$0xff]
      %v528 = vld [vmem:[%s495 + $0x30] sm:$0xff]
      %v529 = vld [vmem:[%s495 + $0x38] sm:$0xff]
      %v530 = vpack.c.bf16 %v523, %v522
      %v531 = vpack.c.bf16 %v525, %v524
      %v532 = vpack.c.bf16 %v527, %v526
      %v533 = vpack.c.bf16 %v529, %v528
      %v534 = vld [vmem:[%s2] sm:$0xf]
      %v535 = vld [vmem:[%s4] sm:$0x3]
      %vm536 = vcmask 31744
      %v538 = vsel %vm536, %v530, 0
      %v541 = vsel %vm536, %v531, 0
      %v544 = vsel %vm536, %v532, 0
      %v547 = vsel %vm536, %v533, 0
      %vm549 = vcmask 1041408
      %v551 = vsel %vm549, %v535, 0
      %553 = vmatprep.subr.bf16.mxu0 0
      %554 = vmatpush1.bf16.msra.mxu0 %v551
      %555 = vmatprep.subr.bf16.mxu0 0
      %556 = vmatpush1.bf16.msra.mxu0 0
      %557 = vmatprep.subr.bf16.mxu0 0
      %558 = vmatpush1.bf16.msra.mxu0 0
      %559 = vmatprep.subr.bf16.mxu0 0
      %560 = vmatpush1.bf16.msra.mxu0 0
      %561 = vmatprep.subr.bf16.mxu0 0
      %562 = vmatpush1.bf16.msra.mxu0 0
      %563 = vmatprep.subr.bf16.mxu0 0
      %564 = vmatpush1.bf16.msra.mxu0 0
      %565 = vmatprep.subr.bf16.mxu0 0
      %566 = vmatpush1.bf16.msra.mxu0 0
      %567 = vmatprep.subr.bf16.mxu0 0
      %568 = vmatpush1.bf16.msra.mxu0 0
      %569 = vmatprep.subr.bf16.mxu0 0
      %570 = vmatpush1.bf16.msra.mxu0 0
      %571 = vmatprep.subr.bf16.mxu0 0
      %572 = vmatpush1.bf16.msra.mxu0 0
      %573 = vmatprep.subr.bf16.mxu0 0
      %574 = vmatpush1.bf16.msra.mxu0 0
      %575 = vmatprep.subr.bf16.mxu0 0
      %576 = vmatpush1.bf16.msra.mxu0 0
      %577 = vmatprep.subr.bf16.mxu0 0
      %578 = vmatpush1.bf16.msra.mxu0 0
      %579 = vmatprep.subr.bf16.mxu0 0
      %580 = vmatpush1.bf16.msra.mxu0 0
      %581 = vmatprep.subr.bf16.mxu0 0
      %582 = vmatpush1.bf16.msra.mxu0 0
      %583 = vmatprep.subr.bf16.mxu0 0
      %584 = vmatpush1.bf16.msra.mxu0 0
      %585 = vmatprep.mubr.bf16.mxu0 0
      %586 = vmatmul.mubr.bf16.gmra.mrb[0].mxu0 %v538
      %v587 = vpop.f32.mrb[0].mxu0
      %v588 = vadd.f32 0.0, %v587
      %v589 = vpop.f32.mrb[0].mxu0
      %v590 = vpop.f32.mrb[0].mxu0
      %v591 = vadd.f32 0.0, %v590
      %v592 = vpop.f32.mrb[0].mxu0
      %593 = vmatprep.mubr.bf16.mxu0 0
      %594 = vmatmul.mubr.bf16.gmra.mrb[0].mxu0 %v541
      %v595 = vpop.f32.mrb[0].mxu0
      %v596 = vadd.f32 0.0, %v595
      %v597 = vpop.f32.mrb[0].mxu0
      %v598 = vpop.f32.mrb[0].mxu0
      %v599 = vadd.f32 0.0, %v598
      %v600 = vpop.f32.mrb[0].mxu0
      %601 = vmatprep.mubr.bf16.mxu0 0
      %602 = vmatmul.mubr.bf16.gmra.mrb[0].mxu0 %v544
      %v603 = vpop.f32.mrb[0].mxu0
      %v604 = vadd.f32 0.0, %v603
      %v605 = vpop.f32.mrb[0].mxu0
      %v606 = vpop.f32.mrb[0].mxu0
      %v607 = vadd.f32 0.0, %v606
      %v608 = vpop.f32.mrb[0].mxu0
      %609 = vmatprep.mubr.bf16.mxu0 0
      %610 = vmatmul.mubr.bf16.gmra.mrb[0].mxu0 %v547
      %v611 = vpop.f32.mrb[0].mxu0
      %v612 = vadd.f32 0.0, %v611
      %v613 = vpop.f32.mrb[0].mxu0
      %v614 = vpop.f32.mrb[0].mxu0
      %v615 = vadd.f32 0.0, %v614
      %v616 = vpop.f32.mrb[0].mxu0
      %617 = vdwg.mxu0
      %vm618 = vcmask 64512
      %v620 = vsel %vm618, %v518, 0
      %v623 = vsel %vm618, %v519, 0
      %v626 = vsel %vm618, %v520, 0
      %v629 = vsel %vm618, %v521, 0
      %vm631 = vcmask 1043456
      %v633 = vsel %vm631, %v534, 0
      %635 = vmatprep.subr.bf16.mxu0 0
      %636 = vmatpush1.bf16.msra.mxu0 %v633
      %637 = vmatprep.subr.bf16.mxu0 0
      %638 = vmatpush1.bf16.msra.mxu0 0
      %639 = vmatprep.subr.bf16.mxu0 0
      %640 = vmatpush1.bf16.msra.mxu0 0
      %641 = vmatprep.subr.bf16.mxu0 0
      %642 = vmatpush1.bf16.msra.mxu0 0
      %643 = vmatprep.subr.bf16.mxu0 0
      %644 = vmatpush1.bf16.msra.mxu0 0
      %645 = vmatprep.subr.bf16.mxu0 0
      %646 = vmatpush1.bf16.msra.mxu0 0
      %647 = vmatprep.subr.bf16.mxu0 0
      %648 = vmatpush1.bf16.msra.mxu0 0
      %649 = vmatprep.subr.bf16.mxu0 0
      %650 = vmatpush1.bf16.msra.mxu0 0
      %651 = vmatprep.subr.bf16.mxu0 0
      %652 = vmatpush1.bf16.msra.mxu0 0
      %653 = vmatprep.subr.bf16.mxu0 0
      %654 = vmatpush1.bf16.msra.mxu0 0
      %655 = vmatprep.subr.bf16.mxu0 0
      %656 = vmatpush1.bf16.msra.mxu0 0
      %657 = vmatprep.subr.bf16.mxu0 0
      %658 = vmatpush1.bf16.msra.mxu0 0
      %659 = vmatprep.subr.bf16.mxu0 0
      %660 = vmatpush1.bf16.msra.mxu0 0
      %661 = vmatprep.subr.bf16.mxu0 0
      %662 = vmatpush1.bf16.msra.mxu0 0
      %663 = vmatprep.subr.bf16.mxu0 0
      %664 = vmatpush1.bf16.msra.mxu0 0
      %665 = vmatprep.subr.bf16.mxu0 0
      %666 = vmatpush1.bf16.msra.mxu0 0
      %667 = vmatprep.mubr.bf16.mxu0 0
      %668 = vmatmul.mubr.bf16.gmra.mrb[0].mxu0 %v620
      %v669 = vpop.f32.mrb[0].mxu0
      %v670 = vadd.f32 %v588, %v669
      %v671 = vpop.f32.mrb[0].mxu0
      %v672 = vpop.f32.mrb[0].mxu0
      %v673 = vadd.f32 %v591, %v672
      %v674 = vpop.f32.mrb[0].mxu0
      %675 = vmatprep.mubr.bf16.mxu0 0
      %676 = vmatmul.mubr.bf16.gmra.mrb[0].mxu0 %v623
      %v677 = vpop.f32.mrb[0].mxu0
      %v678 = vadd.f32 %v596, %v677
      %v679 = vpop.f32.mrb[0].mxu0
      %v680 = vpop.f32.mrb[0].mxu0
      %v681 = vadd.f32 %v599, %v680
      %v682 = vpop.f32.mrb[0].mxu0
      %683 = vmatprep.mubr.bf16.mxu0 0
      %684 = vmatmul.mubr.bf16.gmra.mrb[0].mxu0 %v626
      %v685 = vpop.f32.mrb[0].mxu0
      %v686 = vadd.f32 %v604, %v685
      %v687 = vpop.f32.mrb[0].mxu0
      %v688 = vpop.f32.mrb[0].mxu0
      %v689 = vadd.f32 %v607, %v688
      %v690 = vpop.f32.mrb[0].mxu0
      %691 = vmatprep.mubr.bf16.mxu0 0
      %692 = vmatmul.mubr.bf16.gmra.mrb[0].mxu0 %v629
      %v693 = vpop.f32.mrb[0].mxu0
      %v694 = vadd.f32 %v612, %v693
      %v695 = vpop.f32.mrb[0].mxu0
      %v696 = vpop.f32.mrb[0].mxu0
      %v697 = vadd.f32 %v615, %v696
      %v698 = vpop.f32.mrb[0].mxu0
      %699 = vdwg.mxu0
      %v700 = vld [vmem:[%s3] sm:$0x1]
      %v702 = vlaneseq
      %v703 = vshrl.u32 %v702, 7
      %v704 = vsub.s32 0, %v703
      %v705 = vrot.slane %v700, %v704
      %v707 = vadd.f32 %v670, %v705
      %v708 = vadd.f32 %v673, %v705
      %v709 = vadd.f32 %v678, %v705
      %v710 = vadd.f32 %v681, %v705
      %v711 = vadd.f32 %v686, %v705
      %v712 = vadd.f32 %v689, %v705
      %v713 = vadd.f32 %v694, %v705
      %v714 = vadd.f32 %v697, %v705
      %v715 = vmax.f32 %v707, 0.0
      %v716 = vmax.f32 %v708, 0.0
      %v717 = vmax.f32 %v709, 0.0
      %v718 = vmax.f32 %v710, 0.0
      %v719 = vmax.f32 %v711, 0.0
      %v720 = vmax.f32 %v712, 0.0
      %v721 = vmax.f32 %v713, 0.0
      %v722 = vmax.f32 %v714, 0.0
      %v723 = vpack.c.bf16 %v716, %v715
      %v724 = vpack.c.bf16 %v718, %v717
      %v725 = vpack.c.bf16 %v720, %v719
      %v726 = vpack.c.bf16 %v722, %v721
      %v727 = vld [vmem:[%s5] sm:$0xf]
      %v728 = vld [vmem:[%s5 + $0x4] sm:$0xf]
      %v729 = vld [vmem:[%s5 + $0x8] sm:$0xf]
      %v730 = vld [vmem:[%s5 + $0xc] sm:$0xf]
      %v731 = vld [vmem:[%s5 + $0x10] sm:$0xf]
      %v732 = vld [vmem:[%s5 + $0x14] sm:$0xf]
      %v733 = vld [vmem:[%s5 + $0x18] sm:$0xf]
      %v734 = vld [vmem:[%s5 + $0x1c] sm:$0xf]
      %v735 = vld [vmem:[%s5 + $0x20] sm:$0xf]
      %v736 = vld [vmem:[%s5 + $0x24] sm:$0xf]
      %v737 = vld [vmem:[%s5 + $0x28] sm:$0xf]
      %v738 = vld [vmem:[%s5 + $0x2c] sm:$0xf]
      %v739 = vld [vmem:[%s5 + $0x30] sm:$0xf]
      %v740 = vld [vmem:[%s5 + $0x34] sm:$0xf]
      %v741 = vld [vmem:[%s5 + $0x38] sm:$0xf]
      %v742 = vld [vmem:[%s5 + $0x3c] sm:$0xf]
      %v743 = vld [vmem:[%s6] sm:$0x1]
      %v745 = vlaneseq
      %v746 = vshrl.u32 %v745, 7
      %v747 = vsub.s32 0, %v746
      %v748 = vrot.slane %v743, %v747
      %v766 = vunpack.c.l.b16 %v727
      %v767 = vunpack.c.l.b16 %v728
      %v768 = vunpack.c.l.b16 %v729
      %v769 = vunpack.c.l.b16 %v730
      %v770 = vunpack.c.l.b16 %v731
      %v771 = vunpack.c.l.b16 %v732
      %v772 = vunpack.c.l.b16 %v733
      %v773 = vunpack.c.l.b16 %v734
      %v774 = vunpack.c.l.b16 %v735
      %v775 = vunpack.c.l.b16 %v736
      %v776 = vunpack.c.l.b16 %v737
      %v777 = vunpack.c.l.b16 %v738
      %v778 = vunpack.c.l.b16 %v739
      %v779 = vunpack.c.l.b16 %v740
      %v780 = vunpack.c.l.b16 %v741
      %v781 = vunpack.c.l.b16 %v742
      %v782 = vpack.c.b16 %v767, %v766
      %v783 = vpack.c.b16 %v769, %v768
      %v784 = vpack.c.b16 %v771, %v770
      %v785 = vpack.c.b16 %v773, %v772
      %v786 = vpack.c.b16 %v775, %v774
      %v787 = vpack.c.b16 %v777, %v776
      %v788 = vpack.c.b16 %v779, %v778
      %v789 = vpack.c.b16 %v781, %v780
      %798 = vmatprep.subr.bf16.mxu0 0
      %799 = vmatpush1.bf16.msra.mxu0 %v782
      %800 = vmatprep.subr.bf16.mxu0 0
      %801 = vmatpush1.bf16.msra.mxu0 %v783
      %802 = vmatprep.subr.bf16.mxu0 0
      %803 = vmatpush1.bf16.msra.mxu0 %v784
      %804 = vmatprep.subr.bf16.mxu0 0
      %805 = vmatpush1.bf16.msra.mxu0 %v785
      %806 = vmatprep.subr.bf16.mxu0 0
      %807 = vmatpush1.bf16.msra.mxu0 %v786
      %808 = vmatprep.subr.bf16.mxu0 0
      %809 = vmatpush1.bf16.msra.mxu0 %v787
      %810 = vmatprep.subr.bf16.mxu0 0
      %811 = vmatpush1.bf16.msra.mxu0 %v788
      %812 = vmatprep.subr.bf16.mxu0 0
      %813 = vmatpush1.bf16.msra.mxu0 %v789
      %814 = vmatprep.subr.bf16.mxu0 0
      %815 = vmatpush1.bf16.msra.mxu0 0
      %816 = vmatprep.subr.bf16.mxu0 0
      %817 = vmatpush1.bf16.msra.mxu0 0
      %818 = vmatprep.subr.bf16.mxu0 0
      %819 = vmatpush1.bf16.msra.mxu0 0
      %820 = vmatprep.subr.bf16.mxu0 0
      %821 = vmatpush1.bf16.msra.mxu0 0
      %822 = vmatprep.subr.bf16.mxu0 0
      %823 = vmatpush1.bf16.msra.mxu0 0
      %824 = vmatprep.subr.bf16.mxu0 0
      %825 = vmatpush1.bf16.msra.mxu0 0
      %826 = vmatprep.subr.bf16.mxu0 0
      %827 = vmatpush1.bf16.msra.mxu0 0
      %828 = vmatprep.subr.bf16.mxu0 0
      %829 = vmatpush1.bf16.msra.mxu0 0
      %830 = vmatprep.mubr.bf16.mxu0 0
      %831 = vmatmul.mubr.bf16.gmra.mrb[0].mxu0 %v723
      %v832 = vpop.f32.mrb[0].mxu0
      %v833 = vadd.f32 %v748, %v832
      %v834 = vpop.f32.mrb[0].mxu0
      %v835 = vpop.f32.mrb[0].mxu0
      %v836 = vadd.f32 %v748, %v835
      %v837 = vpop.f32.mrb[0].mxu0
      %838 = vmatprep.mubr.bf16.mxu0 0
      %839 = vmatmul.mubr.bf16.gmra.mrb[0].mxu0 %v724
      %v840 = vpop.f32.mrb[0].mxu0
      %v841 = vadd.f32 %v748, %v840
      %v842 = vpop.f32.mrb[0].mxu0
      %v843 = vpop.f32.mrb[0].mxu0
      %v844 = vadd.f32 %v748, %v843
      %v845 = vpop.f32.mrb[0].mxu0
      %846 = vmatprep.mubr.bf16.mxu0 0
      %847 = vmatmul.mubr.bf16.gmra.mrb[0].mxu0 %v725
      %v848 = vpop.f32.mrb[0].mxu0
      %v849 = vadd.f32 %v748, %v848
      %v850 = vpop.f32.mrb[0].mxu0
      %v851 = vpop.f32.mrb[0].mxu0
      %v852 = vadd.f32 %v748, %v851
      %v853 = vpop.f32.mrb[0].mxu0
      %854 = vmatprep.mubr.bf16.mxu0 0
      %855 = vmatmul.mubr.bf16.gmra.mrb[0].mxu0 %v726
      %v856 = vpop.f32.mrb[0].mxu0
      %v857 = vadd.f32 %v748, %v856
      %v858 = vpop.f32.mrb[0].mxu0
      %v859 = vpop.f32.mrb[0].mxu0
      %v860 = vadd.f32 %v748, %v859
      %v861 = vpop.f32.mrb[0].mxu0
      %862 = vdwg.mxu0
      %v863 = vmax.f32 %v833, 0.0
      %v864 = vmax.f32 %v836, 0.0
      %v865 = vmax.f32 %v841, 0.0
      %v866 = vmax.f32 %v844, 0.0
      %v867 = vmax.f32 %v849, 0.0
      %v868 = vmax.f32 %v852, 0.0
      %v869 = vmax.f32 %v857, 0.0
      %v870 = vmax.f32 %v860, 0.0
      %v871 = vpack.c.bf16 %v864, %v863
      %v872 = vpack.c.bf16 %v866, %v865
      %v873 = vpack.c.bf16 %v868, %v867
      %v874 = vpack.c.bf16 %v870, %v869
      %v875 = vld [vmem:[%s7] sm:$0xf]
      %v876 = vld [vmem:[%s7 + $0x4] sm:$0xf]
      %v877 = vld [vmem:[%s7 + $0x8] sm:$0xf]
      %v878 = vld [vmem:[%s7 + $0xc] sm:$0xf]
      %v879 = vld [vmem:[%s7 + $0x10] sm:$0xf]
      %v880 = vld [vmem:[%s7 + $0x14] sm:$0xf]
      %v881 = vld [vmem:[%s7 + $0x18] sm:$0xf]
      %v882 = vld [vmem:[%s7 + $0x1c] sm:$0xf]
      %v883 = vld [vmem:[%s7 + $0x20] sm:$0xf]
      %v884 = vld [vmem:[%s7 + $0x24] sm:$0xf]
      %v885 = vld [vmem:[%s7 + $0x28] sm:$0xf]
      %v886 = vld [vmem:[%s7 + $0x2c] sm:$0xf]
      %v887 = vld [vmem:[%s7 + $0x30] sm:$0xf]
      %v888 = vld [vmem:[%s7 + $0x34] sm:$0xf]
      %v889 = vld [vmem:[%s7 + $0x38] sm:$0xf]
      %v890 = vld [vmem:[%s7 + $0x3c] sm:$0xf]
      %v891 = vld [vmem:[%s8] sm:$0x1]
      %v893 = vlaneseq
      %v894 = vshrl.u32 %v893, 7
      %v895 = vsub.s32 0, %v894
      %v896 = vrot.slane %v891, %v895
      %v914 = vunpack.c.l.b16 %v875
      %v915 = vunpack.c.l.b16 %v876
      %v916 = vunpack.c.l.b16 %v877
      %v917 = vunpack.c.l.b16 %v878
      %v918 = vunpack.c.l.b16 %v879
      %v919 = vunpack.c.l.b16 %v880
      %v920 = vunpack.c.l.b16 %v881
      %v921 = vunpack.c.l.b16 %v882
      %v922 = vunpack.c.l.b16 %v883
      %v923 = vunpack.c.l.b16 %v884
      %v924 = vunpack.c.l.b16 %v885
      %v925 = vunpack.c.l.b16 %v886
      %v926 = vunpack.c.l.b16 %v887
      %v927 = vunpack.c.l.b16 %v888
      %v928 = vunpack.c.l.b16 %v889
      %v929 = vunpack.c.l.b16 %v890
      %v930 = vpack.c.b16 %v915, %v914
      %v931 = vpack.c.b16 %v917, %v916
      %v932 = vpack.c.b16 %v919, %v918
      %v933 = vpack.c.b16 %v921, %v920
      %v934 = vpack.c.b16 %v923, %v922
      %v935 = vpack.c.b16 %v925, %v924
      %v936 = vpack.c.b16 %v927, %v926
      %v937 = vpack.c.b16 %v929, %v928
      %946 = vmatprep.subr.bf16.mxu0 0
      %947 = vmatpush1.bf16.msra.mxu0 %v930
      %948 = vmatprep.subr.bf16.mxu0 0
      %949 = vmatpush1.bf16.msra.mxu0 %v931
      %950 = vmatprep.subr.bf16.mxu0 0
      %951 = vmatpush1.bf16.msra.mxu0 %v932
      %952 = vmatprep.subr.bf16.mxu0 0
      %953 = vmatpush1.bf16.msra.mxu0 %v933
      %954 = vmatprep.subr.bf16.mxu0 0
      %955 = vmatpush1.bf16.msra.mxu0 %v934
      %956 = vmatprep.subr.bf16.mxu0 0
      %957 = vmatpush1.bf16.msra.mxu0 %v935
      %958 = vmatprep.subr.bf16.mxu0 0
      %959 = vmatpush1.bf16.msra.mxu0 %v936
      %960 = vmatprep.subr.bf16.mxu0 0
      %961 = vmatpush1.bf16.msra.mxu0 %v937
      %962 = vmatprep.subr.bf16.mxu0 0
      %963 = vmatpush1.bf16.msra.mxu0 0
      %964 = vmatprep.subr.bf16.mxu0 0
      %965 = vmatpush1.bf16.msra.mxu0 0
      %966 = vmatprep.subr.bf16.mxu0 0
      %967 = vmatpush1.bf16.msra.mxu0 0
      %968 = vmatprep.subr.bf16.mxu0 0
      %969 = vmatpush1.bf16.msra.mxu0 0
      %970 = vmatprep.subr.bf16.mxu0 0
      %971 = vmatpush1.bf16.msra.mxu0 0
      %972 = vmatprep.subr.bf16.mxu0 0
      %973 = vmatpush1.bf16.msra.mxu0 0
      %974 = vmatprep.subr.bf16.mxu0 0
      %975 = vmatpush1.bf16.msra.mxu0 0
      %976 = vmatprep.subr.bf16.mxu0 0
      %977 = vmatpush1.bf16.msra.mxu0 0
      %978 = vmatprep.mubr.bf16.mxu0 0
      %979 = vmatmul.mubr.bf16.gmra.mrb[0].mxu0 %v871
      %v980 = vpop.f32.mrb[0].mxu0
      %v981 = vadd.f32 %v896, %v980
      %v982 = vpop.f32.mrb[0].mxu0
      %v983 = vpop.f32.mrb[0].mxu0
      %v984 = vadd.f32 %v896, %v983
      %v985 = vpop.f32.mrb[0].mxu0
      %986 = vmatprep.mubr.bf16.mxu0 0
      %987 = vmatmul.mubr.bf16.gmra.mrb[0].mxu0 %v872
      %v988 = vpop.f32.mrb[0].mxu0
      %v989 = vadd.f32 %v896, %v988
      %v990 = vpop.f32.mrb[0].mxu0
      %v991 = vpop.f32.mrb[0].mxu0
      %v992 = vadd.f32 %v896, %v991
      %v993 = vpop.f32.mrb[0].mxu0
      %994 = vmatprep.mubr.bf16.mxu0 0
      %995 = vmatmul.mubr.bf16.gmra.mrb[0].mxu0 %v873
      %v996 = vpop.f32.mrb[0].mxu0
      %v997 = vadd.f32 %v896, %v996
      %v998 = vpop.f32.mrb[0].mxu0
      %v999 = vpop.f32.mrb[0].mxu0
      %v1000 = vadd.f32 %v896, %v999
      %v1001 = vpop.f32.mrb[0].mxu0
      %1002 = vmatprep.mubr.bf16.mxu0 0
      %1003 = vmatmul.mubr.bf16.gmra.mrb[0].mxu0 %v874
      %v1004 = vpop.f32.mrb[0].mxu0
      %v1005 = vadd.f32 %v896, %v1004
      %v1006 = vpop.f32.mrb[0].mxu0
      %v1007 = vpop.f32.mrb[0].mxu0
      %v1008 = vadd.f32 %v896, %v1007
      %v1009 = vpop.f32.mrb[0].mxu0
      %1010 = vdwg.mxu0
      %v1011 = vld [vmem:[%s9] sm:$0xf]
      %v1012 = vld [vmem:[%s9 + $0x4] sm:$0xf]
      %v1013 = vld [vmem:[%s9 + $0x8] sm:$0xf]
      %v1014 = vld [vmem:[%s9 + $0xc] sm:$0xf]
      %v1015 = vld [vmem:[%s9 + $0x10] sm:$0xf]
      %v1016 = vld [vmem:[%s9 + $0x14] sm:$0xf]
      %v1017 = vld [vmem:[%s9 + $0x18] sm:$0xf]
      %v1018 = vld [vmem:[%s9 + $0x1c] sm:$0xf]
      %v1019 = vld [vmem:[%s9 + $0x20] sm:$0xf]
      %v1020 = vld [vmem:[%s9 + $0x24] sm:$0xf]
      %v1021 = vld [vmem:[%s9 + $0x28] sm:$0xf]
      %v1022 = vld [vmem:[%s9 + $0x2c] sm:$0xf]
      %v1023 = vld [vmem:[%s9 + $0x30] sm:$0xf]
      %v1024 = vld [vmem:[%s9 + $0x34] sm:$0xf]
      %v1025 = vld [vmem:[%s9 + $0x38] sm:$0xf]
      %v1026 = vld [vmem:[%s9 + $0x3c] sm:$0xf]
      %v1027 = vld [vmem:[%s10] sm:$0x1]
      %v1029 = vlaneseq
      %v1030 = vshrl.u32 %v1029, 7
      %v1031 = vsub.s32 0, %v1030
      %v1032 = vrot.slane %v1027, %v1031
      %v1050 = vunpack.c.l.b16 %v1011
      %v1051 = vunpack.c.l.b16 %v1012
      %v1052 = vunpack.c.l.b16 %v1013
      %v1053 = vunpack.c.l.b16 %v1014
      %v1054 = vunpack.c.l.b16 %v1015
      %v1055 = vunpack.c.l.b16 %v1016
      %v1056 = vunpack.c.l.b16 %v1017
      %v1057 = vunpack.c.l.b16 %v1018
      %v1058 = vunpack.c.l.b16 %v1019
      %v1059 = vunpack.c.l.b16 %v1020
      %v1060 = vunpack.c.l.b16 %v1021
      %v1061 = vunpack.c.l.b16 %v1022
      %v1062 = vunpack.c.l.b16 %v1023
      %v1063 = vunpack.c.l.b16 %v1024
      %v1064 = vunpack.c.l.b16 %v1025
      %v1065 = vunpack.c.l.b16 %v1026
      %v1066 = vpack.c.b16 %v1051, %v1050
      %v1067 = vpack.c.b16 %v1053, %v1052
      %v1068 = vpack.c.b16 %v1055, %v1054
      %v1069 = vpack.c.b16 %v1057, %v1056
      %v1070 = vpack.c.b16 %v1059, %v1058
      %v1071 = vpack.c.b16 %v1061, %v1060
      %v1072 = vpack.c.b16 %v1063, %v1062
      %v1073 = vpack.c.b16 %v1065, %v1064
      %1082 = vmatprep.subr.bf16.mxu0 0
      %1083 = vmatpush1.bf16.msra.mxu0 %v1066
      %1084 = vmatprep.subr.bf16.mxu0 0
      %1085 = vmatpush1.bf16.msra.mxu0 %v1067
      %1086 = vmatprep.subr.bf16.mxu0 0
      %1087 = vmatpush1.bf16.msra.mxu0 %v1068
      %1088 = vmatprep.subr.bf16.mxu0 0
      %1089 = vmatpush1.bf16.msra.mxu0 %v1069
      %1090 = vmatprep.subr.bf16.mxu0 0
      %1091 = vmatpush1.bf16.msra.mxu0 %v1070
      %1092 = vmatprep.subr.bf16.mxu0 0
      %1093 = vmatpush1.bf16.msra.mxu0 %v1071
      %1094 = vmatprep.subr.bf16.mxu0 0
      %1095 = vmatpush1.bf16.msra.mxu0 %v1072
      %1096 = vmatprep.subr.bf16.mxu0 0
      %1097 = vmatpush1.bf16.msra.mxu0 %v1073
      %1098 = vmatprep.subr.bf16.mxu0 0
      %1099 = vmatpush1.bf16.msra.mxu0 0
      %1100 = vmatprep.subr.bf16.mxu0 0
      %1101 = vmatpush1.bf16.msra.mxu0 0
      %1102 = vmatprep.subr.bf16.mxu0 0
      %1103 = vmatpush1.bf16.msra.mxu0 0
      %1104 = vmatprep.subr.bf16.mxu0 0
      %1105 = vmatpush1.bf16.msra.mxu0 0
      %1106 = vmatprep.subr.bf16.mxu0 0
      %1107 = vmatpush1.bf16.msra.mxu0 0
      %1108 = vmatprep.subr.bf16.mxu0 0
      %1109 = vmatpush1.bf16.msra.mxu0 0
      %1110 = vmatprep.subr.bf16.mxu0 0
      %1111 = vmatpush1.bf16.msra.mxu0 0
      %1112 = vmatprep.subr.bf16.mxu0 0
      %1113 = vmatpush1.bf16.msra.mxu0 0
      %1114 = vmatprep.mubr.bf16.mxu0 0
      %1115 = vmatmul.mubr.bf16.gmra.mrb[0].mxu0 %v871
      %v1116 = vpop.f32.mrb[0].mxu0
      %v1117 = vadd.f32 %v1032, %v1116
      %v1118 = vpop.f32.mrb[0].mxu0
      %v1119 = vpop.f32.mrb[0].mxu0
      %v1120 = vadd.f32 %v1032, %v1119
      %v1121 = vpop.f32.mrb[0].mxu0
      %1122 = vmatprep.mubr.bf16.mxu0 0
      %1123 = vmatmul.mubr.bf16.gmra.mrb[0].mxu0 %v872
      %v1124 = vpop.f32.mrb[0].mxu0
      %v1125 = vadd.f32 %v1032, %v1124
      %v1126 = vpop.f32.mrb[0].mxu0
      %v1127 = vpop.f32.mrb[0].mxu0
      %v1128 = vadd.f32 %v1032, %v1127
      %v1129 = vpop.f32.mrb[0].mxu0
      %1130 = vmatprep.mubr.bf16.mxu0 0
      %1131 = vmatmul.mubr.bf16.gmra.mrb[0].mxu0 %v873
      %v1132 = vpop.f32.mrb[0].mxu0
      %v1133 = vadd.f32 %v1032, %v1132
      %v1134 = vpop.f32.mrb[0].mxu0
      %v1135 = vpop.f32.mrb[0].mxu0
      %v1136 = vadd.f32 %v1032, %v1135
      %v1137 = vpop.f32.mrb[0].mxu0
      %1138 = vmatprep.mubr.bf16.mxu0 0
      %1139 = vmatmul.mubr.bf16.gmra.mrb[0].mxu0 %v874
      %v1140 = vpop.f32.mrb[0].mxu0
      %v1141 = vadd.f32 %v1032, %v1140
      %v1142 = vpop.f32.mrb[0].mxu0
      %v1143 = vpop.f32.mrb[0].mxu0
      %v1144 = vadd.f32 %v1032, %v1143
      %v1145 = vpop.f32.mrb[0].mxu0
      %1146 = vdwg.mxu0
      %v1147 = vld [vmem:[%s11] sm:$0xf]
      %v1148 = vld [vmem:[%s11 + $0x4] sm:$0xf]
      %v1149 = vld [vmem:[%s11 + $0x8] sm:$0xf]
      %v1150 = vld [vmem:[%s11 + $0xc] sm:$0xf]
      %v1151 = vld [vmem:[%s11 + $0x10] sm:$0xf]
      %v1152 = vld [vmem:[%s11 + $0x14] sm:$0xf]
      %v1153 = vld [vmem:[%s11 + $0x18] sm:$0xf]
      %v1154 = vld [vmem:[%s11 + $0x1c] sm:$0xf]
      %v1155 = vld [vmem:[%s11 + $0x20] sm:$0xf]
      %v1156 = vld [vmem:[%s11 + $0x24] sm:$0xf]
      %v1157 = vld [vmem:[%s11 + $0x28] sm:$0xf]
      %v1158 = vld [vmem:[%s11 + $0x2c] sm:$0xf]
      %v1159 = vld [vmem:[%s11 + $0x30] sm:$0xf]
      %v1160 = vld [vmem:[%s11 + $0x34] sm:$0xf]
      %v1161 = vld [vmem:[%s11 + $0x38] sm:$0xf]
      %v1162 = vld [vmem:[%s11 + $0x3c] sm:$0xf]
      %v1163 = vld [vmem:[#allocation2] sm:$0x1]
      %v1165 = vlaneseq
      %v1166 = vshrl.u32 %v1165, 7
      %v1167 = vsub.s32 0, %v1166
      %v1168 = vrot.slane %v1163, %v1167
      %v1186 = vunpack.c.l.b16 %v1147
      %v1187 = vunpack.c.l.b16 %v1148
      %v1188 = vunpack.c.l.b16 %v1149
      %v1189 = vunpack.c.l.b16 %v1150
      %v1190 = vunpack.c.l.b16 %v1151
      %v1191 = vunpack.c.l.b16 %v1152
      %v1192 = vunpack.c.l.b16 %v1153
      %v1193 = vunpack.c.l.b16 %v1154
      %v1194 = vunpack.c.l.b16 %v1155
      %v1195 = vunpack.c.l.b16 %v1156
      %v1196 = vunpack.c.l.b16 %v1157
      %v1197 = vunpack.c.l.b16 %v1158
      %v1198 = vunpack.c.l.b16 %v1159
      %v1199 = vunpack.c.l.b16 %v1160
      %v1200 = vunpack.c.l.b16 %v1161
      %v1201 = vunpack.c.l.b16 %v1162
      %v1202 = vpack.c.b16 %v1187, %v1186
      %v1203 = vpack.c.b16 %v1189, %v1188
      %v1204 = vpack.c.b16 %v1191, %v1190
      %v1205 = vpack.c.b16 %v1193, %v1192
      %v1206 = vpack.c.b16 %v1195, %v1194
      %v1207 = vpack.c.b16 %v1197, %v1196
      %v1208 = vpack.c.b16 %v1199, %v1198
      %v1209 = vpack.c.b16 %v1201, %v1200
      %1218 = vmatprep.subr.bf16.mxu0 0
      %1219 = vmatpush1.bf16.msra.mxu0 %v1202
      %1220 = vmatprep.subr.bf16.mxu0 0
      %1221 = vmatpush1.bf16.msra.mxu0 %v1203
      %1222 = vmatprep.subr.bf16.mxu0 0
      %1223 = vmatpush1.bf16.msra.mxu0 %v1204
      %1224 = vmatprep.subr.bf16.mxu0 0
      %1225 = vmatpush1.bf16.msra.mxu0 %v1205
      %1226 = vmatprep.subr.bf16.mxu0 0
      %1227 = vmatpush1.bf16.msra.mxu0 %v1206
      %1228 = vmatprep.subr.bf16.mxu0 0
      %1229 = vmatpush1.bf16.msra.mxu0 %v1207
      %1230 = vmatprep.subr.bf16.mxu0 0
      %1231 = vmatpush1.bf16.msra.mxu0 %v1208
      %1232 = vmatprep.subr.bf16.mxu0 0
      %1233 = vmatpush1.bf16.msra.mxu0 %v1209
      %1234 = vmatprep.subr.bf16.mxu0 0
      %1235 = vmatpush1.bf16.msra.mxu0 0
      %1236 = vmatprep.subr.bf16.mxu0 0
      %1237 = vmatpush1.bf16.msra.mxu0 0
      %1238 = vmatprep.subr.bf16.mxu0 0
      %1239 = vmatpush1.bf16.msra.mxu0 0
      %1240 = vmatprep.subr.bf16.mxu0 0
      %1241 = vmatpush1.bf16.msra.mxu0 0
      %1242 = vmatprep.subr.bf16.mxu0 0
      %1243 = vmatpush1.bf16.msra.mxu0 0
      %1244 = vmatprep.subr.bf16.mxu0 0
      %1245 = vmatpush1.bf16.msra.mxu0 0
      %1246 = vmatprep.subr.bf16.mxu0 0
      %1247 = vmatpush1.bf16.msra.mxu0 0
      %1248 = vmatprep.subr.bf16.mxu0 0
      %1249 = vmatpush1.bf16.msra.mxu0 0
      %1250 = vmatprep.mubr.bf16.mxu0 0
      %1251 = vmatmul.mubr.bf16.gmra.mrb[0].mxu0 %v871
      %v1252 = vpop.f32.mrb[0].mxu0
      %v1253 = vadd.f32 %v1168, %v1252
      %v1254 = vpop.f32.mrb[0].mxu0
      %v1255 = vpop.f32.mrb[0].mxu0
      %v1256 = vadd.f32 %v1168, %v1255
      %v1257 = vpop.f32.mrb[0].mxu0
      %1258 = vmatprep.mubr.bf16.mxu0 0
      %1259 = vmatmul.mubr.bf16.gmra.mrb[0].mxu0 %v872
      %v1260 = vpop.f32.mrb[0].mxu0
      %v1261 = vadd.f32 %v1168, %v1260
      %v1262 = vpop.f32.mrb[0].mxu0
      %v1263 = vpop.f32.mrb[0].mxu0
      %v1264 = vadd.f32 %v1168, %v1263
      %v1265 = vpop.f32.mrb[0].mxu0
      %1266 = vmatprep.mubr.bf16.mxu0 0
      %1267 = vmatmul.mubr.bf16.gmra.mrb[0].mxu0 %v873
      %v1268 = vpop.f32.mrb[0].mxu0
      %v1269 = vadd.f32 %v1168, %v1268
      %v1270 = vpop.f32.mrb[0].mxu0
      %v1271 = vpop.f32.mrb[0].mxu0
      %v1272 = vadd.f32 %v1168, %v1271
      %v1273 = vpop.f32.mrb[0].mxu0
      %1274 = vmatprep.mubr.bf16.mxu0 0
      %1275 = vmatmul.mubr.bf16.gmra.mrb[0].mxu0 %v874
      %v1276 = vpop.f32.mrb[0].mxu0
      %v1277 = vadd.f32 %v1168, %v1276
      %v1278 = vpop.f32.mrb[0].mxu0
      %v1279 = vpop.f32.mrb[0].mxu0
      %v1280 = vadd.f32 %v1168, %v1279
      %v1281 = vpop.f32.mrb[0].mxu0
      %1282 = vdwg.mxu0
      %v1283 = vsub.f32 %v510, %v981
      %v1284 = vsub.f32 %v511, %v984
      %v1285 = vsub.f32 %v512, %v989
      %v1286 = vsub.f32 %v513, %v992
      %v1287 = vsub.f32 %v514, %v997
      %v1288 = vsub.f32 %v515, %v1000
      %v1289 = vsub.f32 %v516, %v1005
      %v1290 = vsub.f32 %v517, %v1008
      %v1291 = vsub.f32 0.0, %v1117
      %v1292 = vsub.f32 0.0, %v1120
      %v1293 = vsub.f32 0.0, %v1125
      %v1294 = vsub.f32 0.0, %v1128
      %v1295 = vsub.f32 0.0, %v1133
      %v1296 = vsub.f32 0.0, %v1136
      %v1297 = vsub.f32 0.0, %v1141
      %v1298 = vsub.f32 0.0, %v1144
      %v1299 = vmul.f32 %v1291, 1.442695
      %v1300 = vpow.pop %v1299
      %v1301 = vmul.f32 %v1292, 1.442695
      %v1302 = vpow.pop %v1301
      %v1303 = vmul.f32 %v1293, 1.442695
      %v1304 = vpow.pop %v1303
      %v1305 = vmul.f32 %v1294, 1.442695
      %v1306 = vpow.pop %v1305
      %v1307 = vmul.f32 %v1295, 1.442695
      %v1308 = vpow.pop %v1307
      %v1309 = vmul.f32 %v1296, 1.442695
      %v1310 = vpow.pop %v1309
      %v1311 = vmul.f32 %v1297, 1.442695
      %v1312 = vpow.pop %v1311
      %v1313 = vmul.f32 %v1298, 1.442695
      %v1314 = vpow.pop %v1313
      %v1315 = vmul.f32 %v1283, %v1300
      %v1316 = vmul.f32 %v1284, %v1302
      %v1317 = vmul.f32 %v1285, %v1304
      %v1318 = vmul.f32 %v1286, %v1306
      %v1319 = vmul.f32 %v1287, %v1308
      %v1320 = vmul.f32 %v1288, %v1310
      %v1321 = vmul.f32 %v1289, %v1312
      %v1322 = vmul.f32 %v1290, %v1314
      %1323 = vst.msk [vmem:[%s501] sm:$0xff] %vm618, %v1315
      %1324 = vst.msk [vmem:[%s501 + $0x8] sm:$0xff] %vm618, %v1316
      %1325 = vst.msk [vmem:[%s501 + $0x10] sm:$0xff] %vm618, %v1317
      %1326 = vst.msk [vmem:[%s501 + $0x18] sm:$0xff] %vm618, %v1318
      %1327 = vst.msk [vmem:[%s501 + $0x20] sm:$0xff] %vm618, %v1319
      %1328 = vst.msk [vmem:[%s501 + $0x28] sm:$0xff] %vm618, %v1320
      %1329 = vst.msk [vmem:[%s501 + $0x30] sm:$0xff] %vm618, %v1321
      %1330 = vst.msk [vmem:[%s501 + $0x38] sm:$0xff] %vm618, %v1322
      %vm1331 = vcmask 7168
      %1332 = vst.msk [vmem:[%s507] sm:$0xff] %vm1331, %v1253
      %1333 = vst.msk [vmem:[%s507 + $0x8] sm:$0xff] %vm1331, %v1256
      %1334 = vst.msk [vmem:[%s507 + $0x10] sm:$0xff] %vm1331, %v1261
      %1335 = vst.msk [vmem:[%s507 + $0x18] sm:$0xff] %vm1331, %v1264
      %1336 = vst.msk [vmem:[%s507 + $0x20] sm:$0xff] %vm1331, %v1269
      %1337 = vst.msk [vmem:[%s507 + $0x28] sm:$0xff] %vm1331, %v1272
      %1338 = vst.msk [vmem:[%s507 + $0x30] sm:$0xff] %vm1331, %v1277
      %1339 = vst.msk [vmem:[%s507 + $0x38] sm:$0xff] %vm1331, %v1280
      %s1340 = smul.u32 8, %s28
      %p1341 = scmp.lt.s32.totalorder %s1340, 15
      %s1342 = scalar_select %p1341, %s1340, 15
      %s1343 = smul.addr %s1342, 8
      %s1344 = scalar_lea.vmem %s13, %s1343
      %s1345 = smul.u32 8, %s28
      %p1346 = scmp.lt.s32.totalorder %s1345, 15
      %s1347 = scalar_select %p1346, %s1345, 15
      %s1348 = smul.addr %s1347, 8
      %s1349 = scalar_lea.vmem %s14, %s1348
      // Predicated region
      $region73: #{tpu_custom_call.1} parent=71 // pred_check
        %p1350 = pneg %p329
      $region74: #{tpu_custom_call.1} parent=71 // pred_check_branch
        %1352 = sbr.rel (%p1350) target = $region76
      $region75: #{tpu_custom_call.1} parent=71 // pred_region
        %s1353 = smul.u32 8, %s28
      $region76: #{tpu_custom_call.1} parent=71 // pred_fallthru
        _
      // Predicated region
      $region77: #{tpu_custom_call.1} parent=71 // pred_check
        %p1354 = pneg %p355
      $region78: #{tpu_custom_call.1} parent=71 // pred_check_branch
        %1356 = sbr.rel (%p1354) target = $region80
      $region79: #{tpu_custom_call.1} parent=71 // pred_region
        %s1357 = smul.u32 8, %s28
      $region80: #{tpu_custom_call.1} parent=71 // pred_fallthru
        _
    $region72: #{tpu_custom_call.1} parent=5 // pred_fallthru
      _
    %p1358 = scmp.le.s32.totalorder 2, %s23
    // Predicated region
    $region81: #{tpu_custom_call.1} parent=5 // pred_check
      %p1359 = pneg %p1358
    $region82: #{tpu_custom_call.1} parent=5 // pred_check_branch
      %1361 = sbr.rel (%p1359) target = $region84
    $region83: #{tpu_custom_call.1} parent=5 // pred_region
      %s1362 = ssub.s32 %s23, 2
      // Predicated region
      $region85: #{tpu_custom_call.1} parent=83 // pred_check
        %p1363 = pneg %p335
      $region86: #{tpu_custom_call.1} parent=83 // pred_check_branch
        %1365 = sbr.rel (%p1363) target = $region88
      $region87: #{tpu_custom_call.1} parent=83 // pred_region
        %s1366 = smul.u32 8, %s29
        %p1367 = scmp.lt.s32.totalorder %s1366, 15
        %s1368 = scalar_select %p1367, %s1366, 15
        %s1369 = smul.addr %s1368, 8
        %s1370 = scalar_lea.vmem %s13, %s1369
      $region88: #{tpu_custom_call.1} parent=83 // pred_fallthru
        _
      // Predicated region
      $region89: #{tpu_custom_call.1} parent=83 // pred_check
        %p1371 = pneg %p361
      $region90: #{tpu_custom_call.1} parent=83 // pred_check_branch
        %1373 = sbr.rel (%p1371) target = $region92
      $region91: #{tpu_custom_call.1} parent=83 // pred_region
        %s1374 = smul.u32 8, %s29
        %p1375 = scmp.lt.s32.totalorder %s1374, 15
        %s1376 = scalar_select %p1375, %s1374, 15
        %s1377 = smul.addr %s1376, 8
        %s1378 = scalar_lea.vmem %s14, %s1377
      $region92: #{tpu_custom_call.1} parent=83 // pred_fallthru
        _
    $region84: #{tpu_custom_call.1} parent=5 // pred_fallthru
      _
  $region6: #{tpu_custom_call.1} parent=0 // loop_footer
    %s27 = sadd.s32 1, %s23
  $region7: #{tpu_custom_call.1} parent=0 // loop_footer_branch
    %22 = sbr.rel target = $region3
  $region8: #{tpu_custom_call.1} parent=0 // loop_exit
    _

</llo_original>
